<compile_context>
chip_gen: v7x
topology: tpu7x:2x2x1
jax: 0.10.0
libtpu: 0.0.40
codegen_flags: <defaults>
</compile_context>

<pallas_src>
import math
import functools

import jax
import jax.numpy as jnp
import numpy as np
from jax.experimental import pallas as pl
from jax.experimental.pallas import tpu as pltpu


# -----------------------------------------------------------------------------
# Kernel: one batch element per grid step; weights resident in VMEM.
# -----------------------------------------------------------------------------
def _encoder_layer_kernel(x_ref, wqkv_ref, bqkv_ref, wo_ref, bo_ref,
                          g1_ref, be1_ref,
                          wf1_ref, bf1_ref, wf2_ref, bf2_ref,
                          g2_ref, be2_ref,
                          o_ref,
                          ctx_ref,
                          *, n_heads: int, d_model: int):
    f32 = jnp.float32
    x = x_ref[...]                          # (S, D) f32, one batch element
    S, D = x.shape
    dh = d_model // n_heads

    def mm(a, b):
        # Cast the activation to the weight dtype so the optional bf16 weight
        # path uses the MXU's bf16 mode; accumulate in f32 either way.
        return jnp.dot(a.astype(b.dtype), b, preferred_element_type=f32)

    # ---- fused QKV projection: one (S, D) @ (D, 3D) MXU pass -----------------
    # Column layout: [ q (D, scale folded) | k (D) | v (D) ].
    qkv = mm(x, wqkv_ref[...]) + bqkv_ref[...]        # (S, 3D) f32

    # ---- multi-head attention, per batch (no cross-batch work, no mask op) ---
    nt_dims = (((1,), (1,)), ((), ()))     # contract last dims: no explicit K^T
    for h in range(n_heads):               # static loop, static aligned slices
        qh = qkv[:, h * dh:(h + 1) * dh]
        kh = qkv[:, D + h * dh:D + (h + 1) * dh]
        vh = qkv[:, 2 * D + h * dh:2 * D + (h + 1) * dh]
        s = jax.lax.dot_general(qh, kh, nt_dims, preferred_element_type=f32)
        s = s - jnp.max(s, axis=-1, keepdims=True)
        e = jnp.exp(s)
        p = e * pl.reciprocal(jnp.sum(e, axis=-1, keepdims=True), approx=True)
        # store context head at its column offset; full wo matmul comes after
        ctx_ref[:, h * dh:(h + 1) * dh] = mm(p, vh)   # (S, dh)

    # single (S, D) @ (D, D) output projection (K = D, not K = dh)
    attn = mm(ctx_ref[...], wo_ref[...]) + bo_ref[...]

    # ---- residual + LayerNorm 1 (f32 VPU math) -------------------------------
    h1 = x + attn
    mu1 = jnp.mean(h1, axis=-1, keepdims=True)
    var1 = jnp.mean((h1 - mu1) ** 2, axis=-1, keepdims=True)
    h1 = (h1 - mu1) * jax.lax.rsqrt(var1 + 1e-5) * g1_ref[...] + be1_ref[...]

    # ---- position-wise feed forward ------------------------------------------
    f = mm(h1, wf1_ref[...]) + bf1_ref[...]
    f = jnp.maximum(f, 0.0)                           # ReLU
    f = mm(f, wf2_ref[...]) + bf2_ref[...]

    # ---- residual + LayerNorm 2 ----------------------------------------------
    h2 = h1 + f
    mu2 = jnp.mean(h2, axis=-1, keepdims=True)
    var2 = jnp.mean((h2 - mu2) ** 2, axis=-1, keepdims=True)
    o_ref[...] = (h2 - mu2) * jax.lax.rsqrt(var2 + 1e-5) * g2_ref[...] + be2_ref[...]


# -----------------------------------------------------------------------------
# Wrapper
# -----------------------------------------------------------------------------
def encoder_layer_pallas(x, params, n_heads, *, use_bf16_matmul=False):
    B, S, D = x.shape
    assert D % n_heads == 0, "n_heads must divide d_model"
    dh = D // n_heads
    scale = 1.0 / math.sqrt(dh)

    # x stays f32; bf16 casts (if enabled) happen only at matmul inputs
    # inside the kernel, preserving residual/LayerNorm precision.
    x2 = x.reshape(B * S, D).astype(jnp.float32)

    wdtype = jnp.bfloat16 if use_bf16_matmul else jnp.float32
    castw = lambda a: a.astype(wdtype)

    # Fused QKV weight/bias with the softmax scale folded into the Q columns.
    wqkv = jnp.concatenate(
        [params["wq"] * scale, params["wk"], params["wv"]], axis=1)   # (D, 3D)
    bqkv = jnp.concatenate(
        [params["bq"] * scale, params["bk"], params["bv"]], axis=1)   # (1, 3D)

    inputs = [
        x2,
        castw(wqkv), bqkv.astype(jnp.float32),
        castw(params["wo"]), params["bo"],
        params["g1"], params["be1"],
        castw(params["wf1"]), params["bf1"],
        castw(params["wf2"]), params["bf2"],
        params["g2"], params["be2"],
    ]

    # x / out: one (S, D) block per batch element.  Weights/biases: full array,
    # same block every step -> stay resident in VMEM.
    def resident_spec(a):
        nd = a.ndim
        return pl.BlockSpec(a.shape, lambda b, _nd=nd: (0,) * _nd)

    in_specs = [pl.BlockSpec((S, D), lambda b: (b, 0))] + \
               [resident_spec(a) for a in inputs[1:]]

    kernel = functools.partial(_encoder_layer_kernel,
                               n_heads=n_heads, d_model=D)

    out = pl.pallas_call(
        kernel,
        out_shape=jax.ShapeDtypeStruct((B * S, D), jnp.float32),
        grid_spec=pltpu.PrefetchScalarGridSpec(
            num_scalar_prefetch=0,
            grid=(B,),                       # per-batch attention; v7x: 2 TCs busy
            in_specs=in_specs,
            out_specs=pl.BlockSpec((S, D), lambda b: (b, 0)),
            scratch_shapes=[pltpu.VMEM((S, D), jnp.float32)],   # per-head ctx
        ),
        compiler_params=pltpu.CompilerParams(
            dimension_semantics=("parallel",),
            vmem_limit_bytes=16 * 1024 * 1024,   # working set is a few KiB
        ),
    )(*inputs)

    return out.reshape(B, S, D)


# -----------------------------------------------------------------------------
# Pure-JAX reference (standard MHA encoder layer, eval-mode dropout).
# -----------------------------------------------------------------------------
def encoder_layer_ref(x, p, n_heads):
    B, S, D = x.shape
    dh = D // n_heads
    q = x @ p["wq"] + p["bq"]
    k = x @ p["wk"] + p["bk"]
    v = x @ p["wv"] + p["bv"]
    q = q.reshape(B, S, n_heads, dh).transpose(0, 2, 1, 3)
    k = k.reshape(B, S, n_heads, dh).transpose(0, 2, 1, 3)
    v = v.reshape(B, S, n_heads, dh).transpose(0, 2, 1, 3)
    s = jnp.einsum("bhqd,bhkd->bhqk", q, k) / math.sqrt(dh)
    a = jax.nn.softmax(s, axis=-1)
    attn = jnp.einsum("bhqk,bhkd->bhqd", a, v).transpose(0, 2, 1, 3).reshape(B, S, D)
    attn = attn @ p["wo"] + p["bo"]

    def ln(h, g, b):
        mu = jnp.mean(h, axis=-1, keepdims=True)
        var = jnp.mean((h - mu) ** 2, axis=-1, keepdims=True)
        return (h - mu) * jax.lax.rsqrt(var + 1e-5) * g + b

    h1 = ln(x + attn, p["g1"], p["be1"])
    f = jnp.maximum(h1 @ p["wf1"] + p["bf1"], 0.0) @ p["wf2"] + p["bf2"]
    return ln(h1 + f, p["g2"], p["be2"])


# -----------------------------------------------------------------------------
def init_params(key, d_model, d_ff):
    ks = jax.random.split(key, 8)

    def w(k, shape):
        return jax.random.normal(k, shape, jnp.float32) * 0.02

    return {
        "wq": w(ks[0], (d_model, d_model)), "bq": jnp.zeros((1, d_model), jnp.float32),
        "wk": w(ks[1], (d_model, d_model)), "bk": jnp.zeros((1, d_model), jnp.float32),
        "wv": w(ks[2], (d_model, d_model)), "bv": jnp.zeros((1, d_model), jnp.float32),
        "wo": w(ks[3], (d_model, d_model)), "bo": jnp.zeros((1, d_model), jnp.float32),
        "g1": jnp.ones((1, d_model), jnp.float32), "be1": jnp.zeros((1, d_model), jnp.float32),
        "wf1": w(ks[4], (d_model, d_ff)),   "bf1": jnp.zeros((1, d_ff), jnp.float32),
        "wf2": w(ks[5], (d_ff, d_model)),   "bf2": jnp.zeros((1, d_model), jnp.float32),
        "g2": jnp.ones((1, d_model), jnp.float32), "be2": jnp.zeros((1, d_model), jnp.float32),
    }


if __name__ == "__main__":
    B, S, D, H, DFF = 2, 8, 32, 4, 64   # small shapes consistent with the module

    key = jax.random.PRNGKey(0)
    kx, kp = jax.random.split(key)
    x = jax.random.normal(kx, (B, S, D), jnp.float32)
    params = init_params(kp, D, DFF)

    out = encoder_layer_pallas(x, params, n_heads=H)
    out = jax.block_until_ready(out)

    ref = encoder_layer_ref(x, params, n_heads=H)
    # tolerance covers the approx (EUP) reciprocal in the softmax denominator
    np.testing.assert_allclose(np.asarray(out), np.asarray(ref), rtol=1e-3, atol=1e-3)

    print("KERNEL_OK")
</pallas_src>

<mosaic_0001>
module attributes {stable_mosaic.version = 11 : i64} {
  func.func @_encoder_layer_kernel(%arg0: i32, %arg1: memref<8x32xf32, #tpu.memory_space<vmem>>, %arg2: memref<32x96xf32, #tpu.memory_space<vmem>>, %arg3: memref<1x96xf32, #tpu.memory_space<vmem>>, %arg4: memref<32x32xf32, #tpu.memory_space<vmem>>, %arg5: memref<1x32xf32, #tpu.memory_space<vmem>>, %arg6: memref<1x32xf32, #tpu.memory_space<vmem>>, %arg7: memref<1x32xf32, #tpu.memory_space<vmem>>, %arg8: memref<32x64xf32, #tpu.memory_space<vmem>>, %arg9: memref<1x64xf32, #tpu.memory_space<vmem>>, %arg10: memref<64x32xf32, #tpu.memory_space<vmem>>, %arg11: memref<1x32xf32, #tpu.memory_space<vmem>>, %arg12: memref<1x32xf32, #tpu.memory_space<vmem>>, %arg13: memref<1x32xf32, #tpu.memory_space<vmem>>, %arg14: memref<8x32xf32, #tpu.memory_space<vmem>>, %arg15: memref<8x32xf32, #tpu.memory_space<vmem>>) attributes {dimension_semantics = [#tpu.dimension_semantics<parallel>], iteration_bounds = array<i64: 2>, scalar_prefetch = 0 : i64, scratch_operands = 1 : i64, tpu.core_type = #tpu.core_type<tc>, window_params = [{transform_indices = @transform_0, window_bounds = array<i64: 8, 32>}, {pipeline_mode = #tpu.pipeline_mode<synchronous>, transform_indices = @transform_1, window_bounds = array<i64: 32, 96>}, {pipeline_mode = #tpu.pipeline_mode<synchronous>, transform_indices = @transform_2, window_bounds = array<i64: 1, 96>}, {pipeline_mode = #tpu.pipeline_mode<synchronous>, transform_indices = @transform_3, window_bounds = array<i64: 32, 32>}, {pipeline_mode = #tpu.pipeline_mode<synchronous>, transform_indices = @transform_4, window_bounds = array<i64: 1, 32>}, {pipeline_mode = #tpu.pipeline_mode<synchronous>, transform_indices = @transform_5, window_bounds = array<i64: 1, 32>}, {pipeline_mode = #tpu.pipeline_mode<synchronous>, transform_indices = @transform_6, window_bounds = array<i64: 1, 32>}, {pipeline_mode = #tpu.pipeline_mode<synchronous>, transform_indices = @transform_7, window_bounds = array<i64: 32, 64>}, {pipeline_mode = #tpu.pipeline_mode<synchronous>, transform_indices = @transform_8, window_bounds = array<i64: 1, 64>}, {pipeline_mode = #tpu.pipeline_mode<synchronous>, transform_indices = @transform_9, window_bounds = array<i64: 64, 32>}, {pipeline_mode = #tpu.pipeline_mode<synchronous>, transform_indices = @transform_10, window_bounds = array<i64: 1, 32>}, {pipeline_mode = #tpu.pipeline_mode<synchronous>, transform_indices = @transform_11, window_bounds = array<i64: 1, 32>}, {pipeline_mode = #tpu.pipeline_mode<synchronous>, transform_indices = @transform_12, window_bounds = array<i64: 1, 32>}, {transform_indices = @transform_13, window_bounds = array<i64: 8, 32>}]} {
    %c0 = arith.constant 0 : index
    %c0_0 = arith.constant 0 : index
    %0 = vector.load %arg1[%c0, %c0_0] : memref<8x32xf32, #tpu.memory_space<vmem>>, vector<8x32xf32>
    %c0_1 = arith.constant 0 : index
    %c0_2 = arith.constant 0 : index
    %1 = vector.load %arg2[%c0_1, %c0_2] : memref<32x96xf32, #tpu.memory_space<vmem>>, vector<32x96xf32>
    %cst = arith.constant dense<0.000000e+00> : vector<8x96xf32>
    %2 = tpu.matmul %0, %1, %cst {dimension_numbers = #tpu.dot_dimension_numbers<[1], [0], [0], [1], [0, 0, 1, 1], [], []>} : vector<8x32xf32>, vector<32x96xf32>, vector<8x96xf32> -> vector<8x96xf32>
    %c0_3 = arith.constant 0 : index
    %c0_4 = arith.constant 0 : index
    %3 = vector.load %arg3[%c0_3, %c0_4] : memref<1x96xf32, #tpu.memory_space<vmem>>, vector<1x96xf32>
    %4 = vector.broadcast %3 : vector<1x96xf32> to vector<8x96xf32>
    %5 = arith.addf %2, %4 : vector<8x96xf32>
    %6 = vector.extract_strided_slice %5 {offsets = [0, 0], sizes = [8, 8], strides = [1, 1]} : vector<8x96xf32> to vector<8x8xf32>
    %7 = vector.extract_strided_slice %5 {offsets = [0, 32], sizes = [8, 8], strides = [1, 1]} : vector<8x96xf32> to vector<8x8xf32>
    %8 = vector.extract_strided_slice %5 {offsets = [0, 64], sizes = [8, 8], strides = [1, 1]} : vector<8x96xf32> to vector<8x8xf32>
    %cst_5 = arith.constant dense<0.000000e+00> : vector<8x8xf32>
    %9 = tpu.matmul %6, %7, %cst_5 {dimension_numbers = #tpu.dot_dimension_numbers<[1], [1], [0], [0], [0, 0, 1, 0], [], []>} : vector<8x8xf32>, vector<8x8xf32>, vector<8x8xf32> -> vector<8x8xf32>
    %cst_6 = arith.constant dense<0xFF800000> : vector<8xf32>
    %10 = vector.multi_reduction <maximumf>, %9, %cst_6 [1] : vector<8x8xf32> to vector<8xf32>
    %11 = vector.shape_cast %10 : vector<8xf32> to vector<8x1xf32>
    %12 = vector.broadcast %11 : vector<8x1xf32> to vector<8x8xf32>
    %13 = arith.subf %9, %12 : vector<8x8xf32>
    %14 = math.exp %13 : vector<8x8xf32>
    %cst_7 = arith.constant dense<0.000000e+00> : vector<8xf32>
    %15 = vector.multi_reduction <add>, %14, %cst_7 [1] : vector<8x8xf32> to vector<8xf32>
    %16 = vector.shape_cast %15 : vector<8xf32> to vector<8x1xf32>
    %17 = tpu.reciprocal %16 {approx = true} : vector<8x1xf32> -> vector<8x1xf32>
    %18 = vector.broadcast %17 : vector<8x1xf32> to vector<8x8xf32>
    %19 = arith.mulf %14, %18 : vector<8x8xf32>
    %cst_8 = arith.constant dense<0.000000e+00> : vector<8x8xf32>
    %20 = tpu.matmul %19, %8, %cst_8 {dimension_numbers = #tpu.dot_dimension_numbers<[1], [0], [0], [1], [0, 0, 1, 1], [], []>} : vector<8x8xf32>, vector<8x8xf32>, vector<8x8xf32> -> vector<8x8xf32>
    %c0_9 = arith.constant 0 : index
    %c0_10 = arith.constant 0 : index
    %21 = vector.load %arg15[%c0_9, %c0_10] : memref<8x32xf32, #tpu.memory_space<vmem>>, vector<8x8xf32>
    tpu.vector_store %arg15[%c0_9, %c0_10], %20 {strides = array<i32>} : memref<8x32xf32, #tpu.memory_space<vmem>>, vector<8x8xf32>,
    %22 = vector.extract_strided_slice %5 {offsets = [0, 8], sizes = [8, 8], strides = [1, 1]} : vector<8x96xf32> to vector<8x8xf32>
    %23 = vector.extract_strided_slice %5 {offsets = [0, 40], sizes = [8, 8], strides = [1, 1]} : vector<8x96xf32> to vector<8x8xf32>
    %24 = vector.extract_strided_slice %5 {offsets = [0, 72], sizes = [8, 8], strides = [1, 1]} : vector<8x96xf32> to vector<8x8xf32>
    %cst_11 = arith.constant dense<0.000000e+00> : vector<8x8xf32>
    %25 = tpu.matmul %22, %23, %cst_11 {dimension_numbers = #tpu.dot_dimension_numbers<[1], [1], [0], [0], [0, 0, 1, 0], [], []>} : vector<8x8xf32>, vector<8x8xf32>, vector<8x8xf32> -> vector<8x8xf32>
    %cst_12 = arith.constant dense<0xFF800000> : vector<8xf32>
    %26 = vector.multi_reduction <maximumf>, %25, %cst_12 [1] : vector<8x8xf32> to vector<8xf32>
    %27 = vector.shape_cast %26 : vector<8xf32> to vector<8x1xf32>
    %28 = vector.broadcast %27 : vector<8x1xf32> to vector<8x8xf32>
    %29 = arith.subf %25, %28 : vector<8x8xf32>
    %30 = math.exp %29 : vector<8x8xf32>
    %cst_13 = arith.constant dense<0.000000e+00> : vector<8xf32>
    %31 = vector.multi_reduction <add>, %30, %cst_13 [1] : vector<8x8xf32> to vector<8xf32>
    %32 = vector.shape_cast %31 : vector<8xf32> to vector<8x1xf32>
    %33 = tpu.reciprocal %32 {approx = true} : vector<8x1xf32> -> vector<8x1xf32>
    %34 = vector.broadcast %33 : vector<8x1xf32> to vector<8x8xf32>
    %35 = arith.mulf %30, %34 : vector<8x8xf32>
    %cst_14 = arith.constant dense<0.000000e+00> : vector<8x8xf32>
    %36 = tpu.matmul %35, %24, %cst_14 {dimension_numbers = #tpu.dot_dimension_numbers<[1], [0], [0], [1], [0, 0, 1, 1], [], []>} : vector<8x8xf32>, vector<8x8xf32>, vector<8x8xf32> -> vector<8x8xf32>
    %c0_15 = arith.constant 0 : index
    %c8 = arith.constant 8 : index
    %37 = vector.load %arg15[%c0_15, %c8] : memref<8x32xf32, #tpu.memory_space<vmem>>, vector<8x8xf32>
    tpu.vector_store %arg15[%c0_15, %c8], %36 {strides = array<i32>} : memref<8x32xf32, #tpu.memory_space<vmem>>, vector<8x8xf32>,
    %38 = vector.extract_strided_slice %5 {offsets = [0, 16], sizes = [8, 8], strides = [1, 1]} : vector<8x96xf32> to vector<8x8xf32>
    %39 = vector.extract_strided_slice %5 {offsets = [0, 48], sizes = [8, 8], strides = [1, 1]} : vector<8x96xf32> to vector<8x8xf32>
    %40 = vector.extract_strided_slice %5 {offsets = [0, 80], sizes = [8, 8], strides = [1, 1]} : vector<8x96xf32> to vector<8x8xf32>
    %cst_16 = arith.constant dense<0.000000e+00> : vector<8x8xf32>
    %41 = tpu.matmul %38, %39, %cst_16 {dimension_numbers = #tpu.dot_dimension_numbers<[1], [1], [0], [0], [0, 0, 1, 0], [], []>} : vector<8x8xf32>, vector<8x8xf32>, vector<8x8xf32> -> vector<8x8xf32>
    %cst_17 = arith.constant dense<0xFF800000> : vector<8xf32>
    %42 = vector.multi_reduction <maximumf>, %41, %cst_17 [1] : vector<8x8xf32> to vector<8xf32>
    %43 = vector.shape_cast %42 : vector<8xf32> to vector<8x1xf32>
    %44 = vector.broadcast %43 : vector<8x1xf32> to vector<8x8xf32>
    %45 = arith.subf %41, %44 : vector<8x8xf32>
    %46 = math.exp %45 : vector<8x8xf32>
    %cst_18 = arith.constant dense<0.000000e+00> : vector<8xf32>
    %47 = vector.multi_reduction <add>, %46, %cst_18 [1] : vector<8x8xf32> to vector<8xf32>
    %48 = vector.shape_cast %47 : vector<8xf32> to vector<8x1xf32>
    %49 = tpu.reciprocal %48 {approx = true} : vector<8x1xf32> -> vector<8x1xf32>
    %50 = vector.broadcast %49 : vector<8x1xf32> to vector<8x8xf32>
    %51 = arith.mulf %46, %50 : vector<8x8xf32>
    %cst_19 = arith.constant dense<0.000000e+00> : vector<8x8xf32>
    %52 = tpu.matmul %51, %40, %cst_19 {dimension_numbers = #tpu.dot_dimension_numbers<[1], [0], [0], [1], [0, 0, 1, 1], [], []>} : vector<8x8xf32>, vector<8x8xf32>, vector<8x8xf32> -> vector<8x8xf32>
    %c0_20 = arith.constant 0 : index
    %c16 = arith.constant 16 : index
    %53 = vector.load %arg15[%c0_20, %c16] : memref<8x32xf32, #tpu.memory_space<vmem>>, vector<8x8xf32>
    tpu.vector_store %arg15[%c0_20, %c16], %52 {strides = array<i32>} : memref<8x32xf32, #tpu.memory_space<vmem>>, vector<8x8xf32>,
    %54 = vector.extract_strided_slice %5 {offsets = [0, 24], sizes = [8, 8], strides = [1, 1]} : vector<8x96xf32> to vector<8x8xf32>
    %55 = vector.extract_strided_slice %5 {offsets = [0, 56], sizes = [8, 8], strides = [1, 1]} : vector<8x96xf32> to vector<8x8xf32>
    %56 = vector.extract_strided_slice %5 {offsets = [0, 88], sizes = [8, 8], strides = [1, 1]} : vector<8x96xf32> to vector<8x8xf32>
    %cst_21 = arith.constant dense<0.000000e+00> : vector<8x8xf32>
    %57 = tpu.matmul %54, %55, %cst_21 {dimension_numbers = #tpu.dot_dimension_numbers<[1], [1], [0], [0], [0, 0, 1, 0], [], []>} : vector<8x8xf32>, vector<8x8xf32>, vector<8x8xf32> -> vector<8x8xf32>
    %cst_22 = arith.constant dense<0xFF800000> : vector<8xf32>
    %58 = vector.multi_reduction <maximumf>, %57, %cst_22 [1] : vector<8x8xf32> to vector<8xf32>
    %59 = vector.shape_cast %58 : vector<8xf32> to vector<8x1xf32>
    %60 = vector.broadcast %59 : vector<8x1xf32> to vector<8x8xf32>
    %61 = arith.subf %57, %60 : vector<8x8xf32>
    %62 = math.exp %61 : vector<8x8xf32>
    %cst_23 = arith.constant dense<0.000000e+00> : vector<8xf32>
    %63 = vector.multi_reduction <add>, %62, %cst_23 [1] : vector<8x8xf32> to vector<8xf32>
    %64 = vector.shape_cast %63 : vector<8xf32> to vector<8x1xf32>
    %65 = tpu.reciprocal %64 {approx = true} : vector<8x1xf32> -> vector<8x1xf32>
    %66 = vector.broadcast %65 : vector<8x1xf32> to vector<8x8xf32>
    %67 = arith.mulf %62, %66 : vector<8x8xf32>
    %cst_24 = arith.constant dense<0.000000e+00> : vector<8x8xf32>
    %68 = tpu.matmul %67, %56, %cst_24 {dimension_numbers = #tpu.dot_dimension_numbers<[1], [0], [0], [1], [0, 0, 1, 1], [], []>} : vector<8x8xf32>, vector<8x8xf32>, vector<8x8xf32> -> vector<8x8xf32>
    %c0_25 = arith.constant 0 : index
    %c24 = arith.constant 24 : index
    %69 = vector.load %arg15[%c0_25, %c24] : memref<8x32xf32, #tpu.memory_space<vmem>>, vector<8x8xf32>
    tpu.vector_store %arg15[%c0_25, %c24], %68 {strides = array<i32>} : memref<8x32xf32, #tpu.memory_space<vmem>>, vector<8x8xf32>,
    %c0_26 = arith.constant 0 : index
    %c0_27 = arith.constant 0 : index
    %70 = vector.load %arg15[%c0_26, %c0_27] : memref<8x32xf32, #tpu.memory_space<vmem>>, vector<8x32xf32>
    %c0_28 = arith.constant 0 : index
    %c0_29 = arith.constant 0 : index
    %71 = vector.load %arg4[%c0_28, %c0_29] : memref<32x32xf32, #tpu.memory_space<vmem>>, vector<32x32xf32>
    %cst_30 = arith.constant dense<0.000000e+00> : vector<8x32xf32>
    %72 = tpu.matmul %70, %71, %cst_30 {dimension_numbers = #tpu.dot_dimension_numbers<[1], [0], [0], [1], [0, 0, 1, 1], [], []>} : vector<8x32xf32>, vector<32x32xf32>, vector<8x32xf32> -> vector<8x32xf32>
    %c0_31 = arith.constant 0 : index
    %c0_32 = arith.constant 0 : index
    %73 = vector.load %arg5[%c0_31, %c0_32] : memref<1x32xf32, #tpu.memory_space<vmem>>, vector<1x32xf32>
    %74 = vector.broadcast %73 : vector<1x32xf32> to vector<8x32xf32>
    %75 = arith.addf %72, %74 : vector<8x32xf32>
    %76 = arith.addf %0, %75 : vector<8x32xf32>
    %cst_33 = arith.constant dense<0.000000e+00> : vector<8xf32>
    %77 = vector.multi_reduction <add>, %76, %cst_33 [1] : vector<8x32xf32> to vector<8xf32>
    %78 = vector.shape_cast %77 : vector<8xf32> to vector<8x1xf32>
    %cst_34 = arith.constant 3.200000e+01 : f32
    %79 = vector.broadcast %cst_34 : f32 to vector<8x1xf32>
    %80 = arith.divf %78, %79 : vector<8x1xf32>
    %81 = vector.broadcast %80 : vector<8x1xf32> to vector<8x32xf32>
    %82 = arith.subf %76, %81 : vector<8x32xf32>
    %83 = arith.mulf %82, %82 : vector<8x32xf32>
    %cst_35 = arith.constant dense<0.000000e+00> : vector<8xf32>
    %84 = vector.multi_reduction <add>, %83, %cst_35 [1] : vector<8x32xf32> to vector<8xf32>
    %85 = vector.shape_cast %84 : vector<8xf32> to vector<8x1xf32>
    %cst_36 = arith.constant 3.200000e+01 : f32
    %86 = vector.broadcast %cst_36 : f32 to vector<8x1xf32>
    %87 = arith.divf %85, %86 : vector<8x1xf32>
    %88 = vector.broadcast %80 : vector<8x1xf32> to vector<8x32xf32>
    %89 = arith.subf %76, %88 : vector<8x32xf32>
    %cst_37 = arith.constant 9.99999974E-6 : f32
    %90 = vector.broadcast %cst_37 : f32 to vector<8x1xf32>
    %91 = arith.addf %87, %90 : vector<8x1xf32>
    %92 = math.rsqrt %91 : vector<8x1xf32>
    %93 = vector.broadcast %92 : vector<8x1xf32> to vector<8x32xf32>
    %94 = arith.mulf %89, %93 : vector<8x32xf32>
    %c0_38 = arith.constant 0 : index
    %c0_39 = arith.constant 0 : index
    %95 = vector.load %arg6[%c0_38, %c0_39] : memref<1x32xf32, #tpu.memory_space<vmem>>, vector<1x32xf32>
    %96 = vector.broadcast %95 : vector<1x32xf32> to vector<8x32xf32>
    %97 = arith.mulf %94, %96 : vector<8x32xf32>
    %c0_40 = arith.constant 0 : index
    %c0_41 = arith.constant 0 : index
    %98 = vector.load %arg7[%c0_40, %c0_41] : memref<1x32xf32, #tpu.memory_space<vmem>>, vector<1x32xf32>
    %99 = vector.broadcast %98 : vector<1x32xf32> to vector<8x32xf32>
    %100 = arith.addf %97, %99 : vector<8x32xf32>
    %c0_42 = arith.constant 0 : index
    %c0_43 = arith.constant 0 : index
    %101 = vector.load %arg8[%c0_42, %c0_43] : memref<32x64xf32, #tpu.memory_space<vmem>>, vector<32x64xf32>
    %cst_44 = arith.constant dense<0.000000e+00> : vector<8x64xf32>
    %102 = tpu.matmul %100, %101, %cst_44 {dimension_numbers = #tpu.dot_dimension_numbers<[1], [0], [0], [1], [0, 0, 1, 1], [], []>} : vector<8x32xf32>, vector<32x64xf32>, vector<8x64xf32> -> vector<8x64xf32>
    %c0_45 = arith.constant 0 : index
    %c0_46 = arith.constant 0 : index
    %103 = vector.load %arg9[%c0_45, %c0_46] : memref<1x64xf32, #tpu.memory_space<vmem>>, vector<1x64xf32>
    %104 = vector.broadcast %103 : vector<1x64xf32> to vector<8x64xf32>
    %105 = arith.addf %102, %104 : vector<8x64xf32>
    %cst_47 = arith.constant 0.000000e+00 : f32
    %106 = vector.broadcast %cst_47 : f32 to vector<8x64xf32>
    %107 = arith.maximumf %105, %106 : vector<8x64xf32>
    %c0_48 = arith.constant 0 : index
    %c0_49 = arith.constant 0 : index
    %108 = vector.load %arg10[%c0_48, %c0_49] : memref<64x32xf32, #tpu.memory_space<vmem>>, vector<64x32xf32>
    %cst_50 = arith.constant dense<0.000000e+00> : vector<8x32xf32>
    %109 = tpu.matmul %107, %108, %cst_50 {dimension_numbers = #tpu.dot_dimension_numbers<[1], [0], [0], [1], [0, 0, 1, 1], [], []>} : vector<8x64xf32>, vector<64x32xf32>, vector<8x32xf32> -> vector<8x32xf32>
    %c0_51 = arith.constant 0 : index
    %c0_52 = arith.constant 0 : index
    %110 = vector.load %arg11[%c0_51, %c0_52] : memref<1x32xf32, #tpu.memory_space<vmem>>, vector<1x32xf32>
    %111 = vector.broadcast %110 : vector<1x32xf32> to vector<8x32xf32>
    %112 = arith.addf %109, %111 : vector<8x32xf32>
    %113 = arith.addf %100, %112 : vector<8x32xf32>
    %cst_53 = arith.constant dense<0.000000e+00> : vector<8xf32>
    %114 = vector.multi_reduction <add>, %113, %cst_53 [1] : vector<8x32xf32> to vector<8xf32>
    %115 = vector.shape_cast %114 : vector<8xf32> to vector<8x1xf32>
    %cst_54 = arith.constant 3.200000e+01 : f32
    %116 = vector.broadcast %cst_54 : f32 to vector<8x1xf32>
    %117 = arith.divf %115, %116 : vector<8x1xf32>
    %118 = vector.broadcast %117 : vector<8x1xf32> to vector<8x32xf32>
    %119 = arith.subf %113, %118 : vector<8x32xf32>
    %120 = arith.mulf %119, %119 : vector<8x32xf32>
    %cst_55 = arith.constant dense<0.000000e+00> : vector<8xf32>
    %121 = vector.multi_reduction <add>, %120, %cst_55 [1] : vector<8x32xf32> to vector<8xf32>
    %122 = vector.shape_cast %121 : vector<8xf32> to vector<8x1xf32>
    %cst_56 = arith.constant 3.200000e+01 : f32
    %123 = vector.broadcast %cst_56 : f32 to vector<8x1xf32>
    %124 = arith.divf %122, %123 : vector<8x1xf32>
    %125 = vector.broadcast %117 : vector<8x1xf32> to vector<8x32xf32>
    %126 = arith.subf %113, %125 : vector<8x32xf32>
    %cst_57 = arith.constant 9.99999974E-6 : f32
    %127 = vector.broadcast %cst_57 : f32 to vector<8x1xf32>
    %128 = arith.addf %124, %127 : vector<8x1xf32>
    %129 = math.rsqrt %128 : vector<8x1xf32>
    %130 = vector.broadcast %129 : vector<8x1xf32> to vector<8x32xf32>
    %131 = arith.mulf %126, %130 : vector<8x32xf32>
    %c0_58 = arith.constant 0 : index
    %c0_59 = arith.constant 0 : index
    %132 = vector.load %arg12[%c0_58, %c0_59] : memref<1x32xf32, #tpu.memory_space<vmem>>, vector<1x32xf32>
    %133 = vector.broadcast %132 : vector<1x32xf32> to vector<8x32xf32>
    %134 = arith.mulf %131, %133 : vector<8x32xf32>
    %c0_60 = arith.constant 0 : index
    %c0_61 = arith.constant 0 : index
    %135 = vector.load %arg13[%c0_60, %c0_61] : memref<1x32xf32, #tpu.memory_space<vmem>>, vector<1x32xf32>
    %136 = vector.broadcast %135 : vector<1x32xf32> to vector<8x32xf32>
    %137 = arith.addf %134, %136 : vector<8x32xf32>
    %c0_62 = arith.constant 0 : index
    %c0_63 = arith.constant 0 : index
    %138 = vector.load %arg14[%c0_62, %c0_63] : memref<8x32xf32, #tpu.memory_space<vmem>>, vector<8x32xf32>
    tpu.vector_store %arg14[%c0_62, %c0_63], %137 {strides = array<i32>} : memref<8x32xf32, #tpu.memory_space<vmem>>, vector<8x32xf32>,
    return
  }
  func.func @transform_0(%arg0: i32) -> (i32, i32) {
    %c0_i32 = arith.constant 0 : i32
    %c0_i32_0 = arith.constant 0 : i32
    return %arg0, %c0_i32 : i32, i32
  }
  func.func @transform_1(%arg0: i32) -> (i32, i32) {
    %c0_i32 = arith.constant 0 : i32
    %c0_i32_0 = arith.constant 0 : i32
    %c0_i32_1 = arith.constant 0 : i32
    return %c0_i32, %c0_i32_0 : i32, i32
  }
  func.func @transform_2(%arg0: i32) -> (i32, i32) {
    %c0_i32 = arith.constant 0 : i32
    %c0_i32_0 = arith.constant 0 : i32
    %c0_i32_1 = arith.constant 0 : i32
    return %c0_i32, %c0_i32_0 : i32, i32
  }
  func.func @transform_3(%arg0: i32) -> (i32, i32) {
    %c0_i32 = arith.constant 0 : i32
    %c0_i32_0 = arith.constant 0 : i32
    %c0_i32_1 = arith.constant 0 : i32
    return %c0_i32, %c0_i32_0 : i32, i32
  }
  func.func @transform_4(%arg0: i32) -> (i32, i32) {
    %c0_i32 = arith.constant 0 : i32
    %c0_i32_0 = arith.constant 0 : i32
    %c0_i32_1 = arith.constant 0 : i32
    return %c0_i32, %c0_i32_0 : i32, i32
  }
  func.func @transform_5(%arg0: i32) -> (i32, i32) {
    %c0_i32 = arith.constant 0 : i32
    %c0_i32_0 = arith.constant 0 : i32
    %c0_i32_1 = arith.constant 0 : i32
    return %c0_i32, %c0_i32_0 : i32, i32
  }
  func.func @transform_6(%arg0: i32) -> (i32, i32) {
    %c0_i32 = arith.constant 0 : i32
    %c0_i32_0 = arith.constant 0 : i32
    %c0_i32_1 = arith.constant 0 : i32
    return %c0_i32, %c0_i32_0 : i32, i32
  }
  func.func @transform_7(%arg0: i32) -> (i32, i32) {
    %c0_i32 = arith.constant 0 : i32
    %c0_i32_0 = arith.constant 0 : i32
    %c0_i32_1 = arith.constant 0 : i32
    return %c0_i32, %c0_i32_0 : i32, i32
  }
  func.func @transform_8(%arg0: i32) -> (i32, i32) {
    %c0_i32 = arith.constant 0 : i32
    %c0_i32_0 = arith.constant 0 : i32
    %c0_i32_1 = arith.constant 0 : i32
    return %c0_i32, %c0_i32_0 : i32, i32
  }
  func.func @transform_9(%arg0: i32) -> (i32, i32) {
    %c0_i32 = arith.constant 0 : i32
    %c0_i32_0 = arith.constant 0 : i32
    %c0_i32_1 = arith.constant 0 : i32
    return %c0_i32, %c0_i32_0 : i32, i32
  }
  func.func @transform_10(%arg0: i32) -> (i32, i32) {
    %c0_i32 = arith.constant 0 : i32
    %c0_i32_0 = arith.constant 0 : i32
    %c0_i32_1 = arith.constant 0 : i32
    return %c0_i32, %c0_i32_0 : i32, i32
  }
  func.func @transform_11(%arg0: i32) -> (i32, i32) {
    %c0_i32 = arith.constant 0 : i32
    %c0_i32_0 = arith.constant 0 : i32
    %c0_i32_1 = arith.constant 0 : i32
    return %c0_i32, %c0_i32_0 : i32, i32
  }
  func.func @transform_12(%arg0: i32) -> (i32, i32) {
    %c0_i32 = arith.constant 0 : i32
    %c0_i32_0 = arith.constant 0 : i32
    %c0_i32_1 = arith.constant 0 : i32
    return %c0_i32, %c0_i32_0 : i32, i32
  }
  func.func @transform_13(%arg0: i32) -> (i32, i32) {
    %c0_i32 = arith.constant 0 : i32
    %c0_i32_0 = arith.constant 0 : i32
    return %arg0, %c0_i32 : i32, i32
  }
}

</mosaic_0001>

<llo_original>
// kernel: tpu_custom_call.1
$region0: #{tpu_custom_call.1}
  #allocation0 [shape = 'u32[]', space=smem, size = 0x4, offset = 0x4, fixed_abs, tag = 'smem constant byte address 0x4 - core index']
  #allocation1 [shape = 'u32[144,128]{1,0:T(1,128)}', space=vmem, size = 0x12000, scoped, tag = 'internal scratch']
  #allocation2 [shape = 'f32[8,32]{1,0:T(8,128)}', space=vmem, size = 0x1000, scoped, tag = 'scratch operand']
  %s0 = inlined_call_operand.hbm [shape: f32[16,32], index: 0, kind: input, shape index: {}]
  %s1 = inlined_call_operand.vmem [shape: f32[32,96], index: 1, kind: input, shape index: {}]
  %s2 = inlined_call_operand.vmem [shape: f32[1,96], index: 2, kind: input, shape index: {}]
  %s3 = inlined_call_operand.vmem [shape: f32[32,32], index: 3, kind: input, shape index: {}]
  %s4 = inlined_call_operand.vmem [shape: f32[1,32], index: 4, kind: input, shape index: {}]
  %s5 = inlined_call_operand.hbm [shape: f32[1,32], index: 5, kind: input, shape index: {}]
  %s6 = inlined_call_operand.hbm [shape: f32[1,32], index: 6, kind: input, shape index: {}]
  %s7 = inlined_call_operand.vmem [shape: f32[32,64], index: 7, kind: input, shape index: {}]
  %s8 = inlined_call_operand.hbm [shape: f32[1,64], index: 8, kind: input, shape index: {}]
  %s9 = inlined_call_operand.vmem [shape: f32[64,32], index: 9, kind: input, shape index: {}]
  %s10 = inlined_call_operand.vmem [shape: f32[1,32], index: 10, kind: input, shape index: {}]
  %s11 = inlined_call_operand.vmem [shape: f32[1,32], index: 11, kind: input, shape index: {}]
  %s12 = inlined_call_operand.vmem [shape: f32[1,32], index: 12, kind: input, shape index: {}]
  %s13 = inlined_call_operand.hbm [shape: f32[16,32], index: 13, kind: output, shape index: {}]
  %s14 = sld [smem:[#allocation0]]
  $region101: #{tpu_custom_call.1} parent=0
    _
  %s16 = ssub.s32 1, %s14
  %s17 = scalar_select 0, %s16, %s14
  $region1: #{tpu_custom_call.1} parent=0
    #allocation3 [shape = 'u8[8192]{0}', space=vmem, size = 0x2000, scoped, tag = 'input window, operand 0']
    #allocation4 [shape = 's32[2]{0}', space=sflag, size = 0x8, scoped, tag = 'scoped memory for tpu_custom_call.1']
    #allocation5 [shape = 's32[2]{0}', space=sflag, size = 0x8, scoped, tag = 'scoped memory for tpu_custom_call.1']
    #allocation6 [shape = 'u8[512]{0}', space=vmem, size = 0x400, scoped, tag = 'input window, operand 5, single buffered']
    #allocation7 [shape = 's32[1]{0}', space=sflag, size = 0x4, scoped, tag = 'scoped memory for tpu_custom_call.1']
    #allocation8 [shape = 'u8[512]{0}', space=vmem, size = 0x400, scoped, tag = 'input window, operand 6, single buffered']
    #allocation9 [shape = 'u8[512]{0}', space=vmem, size = 0x400, scoped, tag = 'input window, operand 8, single buffered']
    #allocation10 [shape = 's32[1]{0}', space=sflag, size = 0x4, scoped, tag = 'scoped memory for tpu_custom_call.1']
    #allocation11 [shape = 'u8[8192]{0}', space=vmem, size = 0x2000, scoped, tag = 'output window, operand 0']
    %18 = vsyncpa [#allocation4], 0
    %s19 = scalar_lea.sflag [#allocation4], 1
    %20 = vsyncpa %s19, 0
    %21 = vsyncpa [#allocation7], 0
    %22 = vsyncpa [#allocation10], 0
    %23 = vsyncpa [#allocation5], 0
    %s24 = scalar_lea.sflag [#allocation5], 1
    %25 = vsyncpa %s24, 0
    loop: start=0, step=1, limit=4
    $region2: #{tpu_custom_call.1} parent=1 // loop_pre_header
      _
    $region3: #{tpu_custom_call.1} parent=1 // loop_header
      %s27 = sphi 0, %s31
      %p28 = scmp.ge.s32.totalorder %s27, 4
      %s37 = sphi 0, %s39
      %s40 = sphi 0, %s37
      %s41 = sphi 0, %s40
      %s57 = sphi 0, %s41
      %s61 = sphi 0, %s61
      %s63 = sphi 0, %s61
      %s64 = sphi 0, %s63
      %s78 = sphi 0, %s64
      %s82 = sphi 0, %s82
      %s84 = sphi 0, %s82
      %s85 = sphi 0, %s84
      %s99 = sphi 0, %s85
      %s103 = sphi 0, %s103
      %s105 = sphi 0, %s103
      %s106 = sphi 0, %s105
      %s120 = sphi 0, %s106
      %s124 = sphi 0, %s124
      %s126 = sphi 0, %s124
      %s127 = sphi 0, %s126
      %s141 = sphi 0, %s127
      %s145 = sphi 0, %s145
      %s147 = sphi 0, %s145
      %s148 = sphi 0, %s147
      %s162 = sphi 0, %s148
      %s166 = sphi 0, %s166
      %s168 = sphi 0, %s166
      %s169 = sphi 0, %s168
      %s183 = sphi 0, %s169
      %s187 = sphi 0, %s187
      %s189 = sphi 0, %s187
      %s190 = sphi 0, %s189
      %s204 = sphi 0, %s190
      %s208 = sphi 0, %s208
      %s210 = sphi 0, %s208
      %s211 = sphi 0, %s210
      %s225 = sphi 0, %s211
      %s229 = sphi 0, %s229
      %s231 = sphi 0, %s229
      %s232 = sphi 0, %s231
      %s246 = sphi 0, %s232
      %s250 = sphi 0, %s250
      %s252 = sphi 0, %s250
      %s253 = sphi 0, %s252
      %s267 = sphi 0, %s253
      %s271 = sphi 0, %s271
      %s273 = sphi 0, %s271
      %s274 = sphi 0, %s273
      %s288 = sphi 0, %s274
      %s292 = sphi 0, %s292
      %s294 = sphi 0, %s292
      %s295 = sphi 0, %s294
      %s309 = sphi 0, %s295
      %s315 = sphi 0, %s317
      %s318 = sphi 0, %s315
      %s319 = sphi 0, %s318
      %s335 = sphi 0, %s319
    $region4: #{tpu_custom_call.1} parent=1 // loop_header_branch
      %30 = sbr.rel (%p28) target = $region8
    $region5: #{tpu_custom_call.1} parent=1 // loop_body
      %s32 = ssub.s32 %s27, 1
      %s33 = ssub.s32 %s27, 2
      %s34 = sadd.s32 %s27, 1
      %s35 = ssub.s32 %s27, %s34
      %p36 = scmp.eq.s32.totalorder %s35, 0
      %s38 = sadd.s32 %s37, 1
      %s39 = scalar_select %p36, %s37, %s38
      %p42 = pneg %p36
      %p43 = scmp.eq.s32.totalorder %s27, 1
      %p44 = por %p42, %p43
      %p45 = scmp.ne.s32.totalorder %s37, %s40
      %p46 = scmp.eq.s32.totalorder %s27, 0
      %p47 = por %p45, %p46
      %p48 = scmp.ne.s32.totalorder %s37, %s40
      %p49 = scmp.eq.s32.totalorder %s32, 1
      %p50 = por %p48, %p49
      %p51 = scmp.ne.s32.totalorder %s40, %s41
      %p52 = scmp.eq.s32.totalorder %s32, 0
      %p53 = por %p51, %p52
      %p54 = scmp.ne.s32.totalorder %s40, %s41
      %p55 = scmp.eq.s32.totalorder %s33, 1
      %p56 = por %p54, %p55
      %p58 = scmp.ne.s32.totalorder %s41, %s57
      %p59 = scmp.eq.s32.totalorder %s33, 0
      %p60 = por %p58, %p59
      %s62 = sadd.s32 %s61, 1
      %p65 = scmp.eq.s32.totalorder %s27, 1
      %p66 = scmp.ne.s32.totalorder %s61, %s63
      %p67 = scmp.eq.s32.totalorder %s27, 0
      %p68 = por %p66, %p67
      %p69 = scmp.ne.s32.totalorder %s61, %s63
      %p70 = scmp.eq.s32.totalorder %s32, 1
      %p71 = por %p69, %p70
      %p72 = scmp.ne.s32.totalorder %s63, %s64
      %p73 = scmp.eq.s32.totalorder %s32, 0
      %p74 = por %p72, %p73
      %p75 = scmp.ne.s32.totalorder %s63, %s64
      %p76 = scmp.eq.s32.totalorder %s33, 1
      %p77 = por %p75, %p76
      %p79 = scmp.ne.s32.totalorder %s64, %s78
      %p80 = scmp.eq.s32.totalorder %s33, 0
      %p81 = por %p79, %p80
      %s83 = sadd.s32 %s82, 1
      %p86 = scmp.eq.s32.totalorder %s27, 1
      %p87 = scmp.ne.s32.totalorder %s82, %s84
      %p88 = scmp.eq.s32.totalorder %s27, 0
      %p89 = por %p87, %p88
      %p90 = scmp.ne.s32.totalorder %s82, %s84
      %p91 = scmp.eq.s32.totalorder %s32, 1
      %p92 = por %p90, %p91
      %p93 = scmp.ne.s32.totalorder %s84, %s85
      %p94 = scmp.eq.s32.totalorder %s32, 0
      %p95 = por %p93, %p94
      %p96 = scmp.ne.s32.totalorder %s84, %s85
      %p97 = scmp.eq.s32.totalorder %s33, 1
      %p98 = por %p96, %p97
      %p100 = scmp.ne.s32.totalorder %s85, %s99
      %p101 = scmp.eq.s32.totalorder %s33, 0
      %p102 = por %p100, %p101
      %s104 = sadd.s32 %s103, 1
      %p107 = scmp.eq.s32.totalorder %s27, 1
      %p108 = scmp.ne.s32.totalorder %s103, %s105
      %p109 = scmp.eq.s32.totalorder %s27, 0
      %p110 = por %p108, %p109
      %p111 = scmp.ne.s32.totalorder %s103, %s105
      %p112 = scmp.eq.s32.totalorder %s32, 1
      %p113 = por %p111, %p112
      %p114 = scmp.ne.s32.totalorder %s105, %s106
      %p115 = scmp.eq.s32.totalorder %s32, 0
      %p116 = por %p114, %p115
      %p117 = scmp.ne.s32.totalorder %s105, %s106
      %p118 = scmp.eq.s32.totalorder %s33, 1
      %p119 = por %p117, %p118
      %p121 = scmp.ne.s32.totalorder %s106, %s120
      %p122 = scmp.eq.s32.totalorder %s33, 0
      %p123 = por %p121, %p122
      %s125 = sadd.s32 %s124, 1
      %p128 = scmp.eq.s32.totalorder %s27, 1
      %p129 = scmp.ne.s32.totalorder %s124, %s126
      %p130 = scmp.eq.s32.totalorder %s27, 0
      %p131 = por %p129, %p130
      %p132 = scmp.ne.s32.totalorder %s124, %s126
      %p133 = scmp.eq.s32.totalorder %s32, 1
      %p134 = por %p132, %p133
      %p135 = scmp.ne.s32.totalorder %s126, %s127
      %p136 = scmp.eq.s32.totalorder %s32, 0
      %p137 = por %p135, %p136
      %p138 = scmp.ne.s32.totalorder %s126, %s127
      %p139 = scmp.eq.s32.totalorder %s33, 1
      %p140 = por %p138, %p139
      %p142 = scmp.ne.s32.totalorder %s127, %s141
      %p143 = scmp.eq.s32.totalorder %s33, 0
      %p144 = por %p142, %p143
      %s146 = sadd.s32 %s145, 1
      %p149 = scmp.eq.s32.totalorder %s27, 1
      %p150 = scmp.ne.s32.totalorder %s145, %s147
      %p151 = scmp.eq.s32.totalorder %s27, 0
      %p152 = por %p150, %p151
      %p153 = scmp.ne.s32.totalorder %s145, %s147
      %p154 = scmp.eq.s32.totalorder %s32, 1
      %p155 = por %p153, %p154
      %p156 = scmp.ne.s32.totalorder %s147, %s148
      %p157 = scmp.eq.s32.totalorder %s32, 0
      %p158 = por %p156, %p157
      %p159 = scmp.ne.s32.totalorder %s147, %s148
      %p160 = scmp.eq.s32.totalorder %s33, 1
      %p161 = por %p159, %p160
      %p163 = scmp.ne.s32.totalorder %s148, %s162
      %p164 = scmp.eq.s32.totalorder %s33, 0
      %p165 = por %p163, %p164
      %s167 = sadd.s32 %s166, 1
      %p170 = scmp.eq.s32.totalorder %s27, 1
      %p171 = scmp.ne.s32.totalorder %s166, %s168
      %p172 = scmp.eq.s32.totalorder %s27, 0
      %p173 = por %p171, %p172
      %p174 = scmp.ne.s32.totalorder %s166, %s168
      %p175 = scmp.eq.s32.totalorder %s32, 1
      %p176 = por %p174, %p175
      %p177 = scmp.ne.s32.totalorder %s168, %s169
      %p178 = scmp.eq.s32.totalorder %s32, 0
      %p179 = por %p177, %p178
      %p180 = scmp.ne.s32.totalorder %s168, %s169
      %p181 = scmp.eq.s32.totalorder %s33, 1
      %p182 = por %p180, %p181
      %p184 = scmp.ne.s32.totalorder %s169, %s183
      %p185 = scmp.eq.s32.totalorder %s33, 0
      %p186 = por %p184, %p185
      %s188 = sadd.s32 %s187, 1
      %p191 = scmp.eq.s32.totalorder %s27, 1
      %p192 = scmp.ne.s32.totalorder %s187, %s189
      %p193 = scmp.eq.s32.totalorder %s27, 0
      %p194 = por %p192, %p193
      %p195 = scmp.ne.s32.totalorder %s187, %s189
      %p196 = scmp.eq.s32.totalorder %s32, 1
      %p197 = por %p195, %p196
      %p198 = scmp.ne.s32.totalorder %s189, %s190
      %p199 = scmp.eq.s32.totalorder %s32, 0
      %p200 = por %p198, %p199
      %p201 = scmp.ne.s32.totalorder %s189, %s190
      %p202 = scmp.eq.s32.totalorder %s33, 1
      %p203 = por %p201, %p202
      %p205 = scmp.ne.s32.totalorder %s190, %s204
      %p206 = scmp.eq.s32.totalorder %s33, 0
      %p207 = por %p205, %p206
      %s209 = sadd.s32 %s208, 1
      %p212 = scmp.eq.s32.totalorder %s27, 1
      %p213 = scmp.ne.s32.totalorder %s208, %s210
      %p214 = scmp.eq.s32.totalorder %s27, 0
      %p215 = por %p213, %p214
      %p216 = scmp.ne.s32.totalorder %s208, %s210
      %p217 = scmp.eq.s32.totalorder %s32, 1
      %p218 = por %p216, %p217
      %p219 = scmp.ne.s32.totalorder %s210, %s211
      %p220 = scmp.eq.s32.totalorder %s32, 0
      %p221 = por %p219, %p220
      %p222 = scmp.ne.s32.totalorder %s210, %s211
      %p223 = scmp.eq.s32.totalorder %s33, 1
      %p224 = por %p222, %p223
      %p226 = scmp.ne.s32.totalorder %s211, %s225
      %p227 = scmp.eq.s32.totalorder %s33, 0
      %p228 = por %p226, %p227
      %s230 = sadd.s32 %s229, 1
      %p233 = scmp.eq.s32.totalorder %s27, 1
      %p234 = scmp.ne.s32.totalorder %s229, %s231
      %p235 = scmp.eq.s32.totalorder %s27, 0
      %p236 = por %p234, %p235
      %p237 = scmp.ne.s32.totalorder %s229, %s231
      %p238 = scmp.eq.s32.totalorder %s32, 1
      %p239 = por %p237, %p238
      %p240 = scmp.ne.s32.totalorder %s231, %s232
      %p241 = scmp.eq.s32.totalorder %s32, 0
      %p242 = por %p240, %p241
      %p243 = scmp.ne.s32.totalorder %s231, %s232
      %p244 = scmp.eq.s32.totalorder %s33, 1
      %p245 = por %p243, %p244
      %p247 = scmp.ne.s32.totalorder %s232, %s246
      %p248 = scmp.eq.s32.totalorder %s33, 0
      %p249 = por %p247, %p248
      %s251 = sadd.s32 %s250, 1
      %p254 = scmp.eq.s32.totalorder %s27, 1
      %p255 = scmp.ne.s32.totalorder %s250, %s252
      %p256 = scmp.eq.s32.totalorder %s27, 0
      %p257 = por %p255, %p256
      %p258 = scmp.ne.s32.totalorder %s250, %s252
      %p259 = scmp.eq.s32.totalorder %s32, 1
      %p260 = por %p258, %p259
      %p261 = scmp.ne.s32.totalorder %s252, %s253
      %p262 = scmp.eq.s32.totalorder %s32, 0
      %p263 = por %p261, %p262
      %p264 = scmp.ne.s32.totalorder %s252, %s253
      %p265 = scmp.eq.s32.totalorder %s33, 1
      %p266 = por %p264, %p265
      %p268 = scmp.ne.s32.totalorder %s253, %s267
      %p269 = scmp.eq.s32.totalorder %s33, 0
      %p270 = por %p268, %p269
      %s272 = sadd.s32 %s271, 1
      %p275 = scmp.eq.s32.totalorder %s27, 1
      %p276 = scmp.ne.s32.totalorder %s271, %s273
      %p277 = scmp.eq.s32.totalorder %s27, 0
      %p278 = por %p276, %p277
      %p279 = scmp.ne.s32.totalorder %s271, %s273
      %p280 = scmp.eq.s32.totalorder %s32, 1
      %p281 = por %p279, %p280
      %p282 = scmp.ne.s32.totalorder %s273, %s274
      %p283 = scmp.eq.s32.totalorder %s32, 0
      %p284 = por %p282, %p283
      %p285 = scmp.ne.s32.totalorder %s273, %s274
      %p286 = scmp.eq.s32.totalorder %s33, 1
      %p287 = por %p285, %p286
      %p289 = scmp.ne.s32.totalorder %s274, %s288
      %p290 = scmp.eq.s32.totalorder %s33, 0
      %p291 = por %p289, %p290
      %s293 = sadd.s32 %s292, 1
      %p296 = scmp.eq.s32.totalorder %s27, 1
      %p297 = scmp.ne.s32.totalorder %s292, %s294
      %p298 = scmp.eq.s32.totalorder %s27, 0
      %p299 = por %p297, %p298
      %p300 = scmp.ne.s32.totalorder %s292, %s294
      %p301 = scmp.eq.s32.totalorder %s32, 1
      %p302 = por %p300, %p301
      %p303 = scmp.ne.s32.totalorder %s294, %s295
      %p304 = scmp.eq.s32.totalorder %s32, 0
      %p305 = por %p303, %p304
      %p306 = scmp.ne.s32.totalorder %s294, %s295
      %p307 = scmp.eq.s32.totalorder %s33, 1
      %p308 = por %p306, %p307
      %p310 = scmp.ne.s32.totalorder %s295, %s309
      %p311 = scmp.eq.s32.totalorder %s33, 0
      %p312 = por %p310, %p311
      %s313 = ssub.s32 %s27, %s34
      %p314 = scmp.eq.s32.totalorder %s313, 0
      %s316 = sadd.s32 %s315, 1
      %s317 = scalar_select %p314, %s315, %s316
      %p320 = pneg %p314
      %p321 = scmp.eq.s32.totalorder %s27, 1
      %p322 = por %p320, %p321
      %p323 = scmp.ne.s32.totalorder %s315, %s318
      %p324 = scmp.eq.s32.totalorder %s27, 0
      %p325 = por %p323, %p324
      %p326 = scmp.ne.s32.totalorder %s315, %s318
      %p327 = scmp.eq.s32.totalorder %s32, 1
      %p328 = por %p326, %p327
      %p329 = scmp.ne.s32.totalorder %s318, %s319
      %p330 = scmp.eq.s32.totalorder %s32, 0
      %p331 = por %p329, %p330
      %p332 = scmp.ne.s32.totalorder %s318, %s319
      %p333 = scmp.eq.s32.totalorder %s33, 1
      %p334 = por %p332, %p333
      %p336 = scmp.ne.s32.totalorder %s319, %s335
      %p337 = scmp.eq.s32.totalorder %s33, 0
      %p338 = por %p336, %p337
      %p339 = scmp.le.s32.totalorder 1, %s27
      %p340 = scmp.lt.s32.totalorder %s27, 3
      %p341 = pnand %p339, %p340
      %p342 = pneg %p341
      // Predicated region
      $region9: #{tpu_custom_call.1} parent=5 // pred_check
        _
      $region10: #{tpu_custom_call.1} parent=5 // pred_check_branch
        %344 = sbr.rel (%p341) target = $region12
      $region11: #{tpu_custom_call.1} parent=5 // pred_region
        %s345 = ssub.s32 %s27, 1
        // Predicated region
        $region13: #{tpu_custom_call.1} parent=11 // pred_check
          %p346 = pneg %p74
        $region14: #{tpu_custom_call.1} parent=11 // pred_check_branch
          %348 = sbr.rel (%p346) target = $region16
        $region15: #{tpu_custom_call.1} parent=11 // pred_region
          _
        $region16: #{tpu_custom_call.1} parent=11 // pred_fallthru
          _
        // Predicated region
        $region17: #{tpu_custom_call.1} parent=11 // pred_check
          %p349 = pneg %p95
        $region18: #{tpu_custom_call.1} parent=11 // pred_check_branch
          %351 = sbr.rel (%p349) target = $region20
        $region19: #{tpu_custom_call.1} parent=11 // pred_region
          _
        $region20: #{tpu_custom_call.1} parent=11 // pred_fallthru
          _
        // Predicated region
        $region21: #{tpu_custom_call.1} parent=11 // pred_check
          %p352 = pneg %p116
        $region22: #{tpu_custom_call.1} parent=11 // pred_check_branch
          %354 = sbr.rel (%p352) target = $region24
        $region23: #{tpu_custom_call.1} parent=11 // pred_region
          _
        $region24: #{tpu_custom_call.1} parent=11 // pred_fallthru
          _
        // Predicated region
        $region25: #{tpu_custom_call.1} parent=11 // pred_check
          %p355 = pneg %p137
        $region26: #{tpu_custom_call.1} parent=11 // pred_check_branch
          %357 = sbr.rel (%p355) target = $region28
        $region27: #{tpu_custom_call.1} parent=11 // pred_region
          _
        $region28: #{tpu_custom_call.1} parent=11 // pred_fallthru
          _
        // Predicated region
        $region29: #{tpu_custom_call.1} parent=11 // pred_check
          %p358 = pneg %p158
        $region30: #{tpu_custom_call.1} parent=11 // pred_check_branch
          %360 = sbr.rel (%p358) target = $region32
        $region31: #{tpu_custom_call.1} parent=11 // pred_region
          %s362 = ssub.s32 16, 16
          %363 = vsyncadd [#allocation7], %s362
          %s365 = sshll.u32 [#allocation6], 4
          %s366 = int_to_ptr.vmem [resolvable:$true] %s365
          %368 = dma.hbm_to_vmem [thread:$0]  %s5, 16, %s366, [#allocation7]
        $region32: #{tpu_custom_call.1} parent=11 // pred_fallthru
          _
        // Predicated region
        $region33: #{tpu_custom_call.1} parent=11 // pred_check
          %p369 = pneg %p179
        $region34: #{tpu_custom_call.1} parent=11 // pred_check_branch
          %371 = sbr.rel (%p369) target = $region36
        $region35: #{tpu_custom_call.1} parent=11 // pred_region
          %s373 = ssub.s32 16, 16
          %374 = vsyncadd [#allocation7], %s373
          %s376 = sshll.u32 [#allocation8], 4
          %s377 = int_to_ptr.vmem [resolvable:$true] %s376
          %379 = dma.hbm_to_vmem [thread:$0]  %s6, 16, %s377, [#allocation7]
        $region36: #{tpu_custom_call.1} parent=11 // pred_fallthru
          _
        // Predicated region
        $region37: #{tpu_custom_call.1} parent=11 // pred_check
          %p380 = pneg %p200
        $region38: #{tpu_custom_call.1} parent=11 // pred_check_branch
          %382 = sbr.rel (%p380) target = $region40
        $region39: #{tpu_custom_call.1} parent=11 // pred_region
          _
        $region40: #{tpu_custom_call.1} parent=11 // pred_fallthru
          _
        // Predicated region
        $region41: #{tpu_custom_call.1} parent=11 // pred_check
          %p383 = pneg %p221
        $region42: #{tpu_custom_call.1} parent=11 // pred_check_branch
          %385 = sbr.rel (%p383) target = $region44
        $region43: #{tpu_custom_call.1} parent=11 // pred_region
          %s387 = ssub.s32 16, 16
          %388 = vsyncadd [#allocation10], %s387
          %s390 = sshll.u32 [#allocation9], 4
          %s391 = int_to_ptr.vmem [resolvable:$true] %s390
          %393 = dma.hbm_to_vmem [thread:$0]  %s8, 16, %s391, [#allocation10]
        $region44: #{tpu_custom_call.1} parent=11 // pred_fallthru
          _
        // Predicated region
        $region45: #{tpu_custom_call.1} parent=11 // pred_check
          %p394 = pneg %p242
        $region46: #{tpu_custom_call.1} parent=11 // pred_check_branch
          %396 = sbr.rel (%p394) target = $region48
        $region47: #{tpu_custom_call.1} parent=11 // pred_region
          _
        $region48: #{tpu_custom_call.1} parent=11 // pred_fallthru
          _
        // Predicated region
        $region49: #{tpu_custom_call.1} parent=11 // pred_check
          %p397 = pneg %p263
        $region50: #{tpu_custom_call.1} parent=11 // pred_check_branch
          %399 = sbr.rel (%p397) target = $region52
        $region51: #{tpu_custom_call.1} parent=11 // pred_region
          _
        $region52: #{tpu_custom_call.1} parent=11 // pred_fallthru
          _
        // Predicated region
        $region53: #{tpu_custom_call.1} parent=11 // pred_check
          %p400 = pneg %p284
        $region54: #{tpu_custom_call.1} parent=11 // pred_check_branch
          %402 = sbr.rel (%p400) target = $region56
        $region55: #{tpu_custom_call.1} parent=11 // pred_region
          _
        $region56: #{tpu_custom_call.1} parent=11 // pred_fallthru
          _
        // Predicated region
        $region57: #{tpu_custom_call.1} parent=11 // pred_check
          %p403 = pneg %p305
        $region58: #{tpu_custom_call.1} parent=11 // pred_check_branch
          %405 = sbr.rel (%p403) target = $region60
        $region59: #{tpu_custom_call.1} parent=11 // pred_region
          _
        $region60: #{tpu_custom_call.1} parent=11 // pred_fallthru
          _
      $region12: #{tpu_custom_call.1} parent=5 // pred_fallthru
        _
      %p406 = scmp.lt.s32.totalorder %s27, 2
      // Predicated region
      $region61: #{tpu_custom_call.1} parent=5 // pred_check
        %p407 = pneg %p406
      $region62: #{tpu_custom_call.1} parent=5 // pred_check_branch
        %409 = sbr.rel (%p407) target = $region64
      $region63: #{tpu_custom_call.1} parent=5 // pred_region
        // Predicated region
        $region65: #{tpu_custom_call.1} parent=63 // pred_check
          %p410 = pneg %p47
        $region66: #{tpu_custom_call.1} parent=63 // pred_check_branch
          %412 = sbr.rel (%p410) target = $region68
        $region67: #{tpu_custom_call.1} parent=63 // pred_region
          %s413 = sand.u32 %s37, 1
          %s414 = scalar_lea.sflag [#allocation4], %s413
          %s415 = sand.u32 %s37, 1
          %s416 = smul.addr %s415, 8
          %s417 = scalar_lea.vmem [#allocation3], %s416
          %s419 = ssub.s32 128, 128
          %420 = vsyncadd %s414, %s419
          %s421 = smul.addr %s27, 128
          %s422 = scalar_lea.hbm %s0, %s421
          %s424 = sshll.u32 %s417, 4
          %s425 = int_to_ptr.vmem [resolvable:$true] %s424
          %427 = dma.hbm_to_vmem [thread:$0]  %s422, 128, %s425, %s414
        $region68: #{tpu_custom_call.1} parent=63 // pred_fallthru
          _
      $region64: #{tpu_custom_call.1} parent=5 // pred_fallthru
        _
      %p428 = scmp.le.s32.totalorder 1, %s27
      %p429 = scmp.lt.s32.totalorder %s27, 3
      %p430 = pnand %p428, %p429
      %p431 = pneg %p430
      // Predicated region
      $region69: #{tpu_custom_call.1} parent=5 // pred_check
        _
      $region70: #{tpu_custom_call.1} parent=5 // pred_check_branch
        %433 = sbr.rel (%p430) target = $region72
      $region71: #{tpu_custom_call.1} parent=5 // pred_region
        %s434 = ssub.s32 %s27, 1
        %s435 = sand.u32 %s40, 1
        %s436 = scalar_lea.sflag [#allocation4], %s435
        %s437 = sand.u32 %s40, 1
        %s438 = smul.addr %s437, 8
        %s439 = scalar_lea.vmem [#allocation3], %s438
        // Predicated region
        $region73: #{tpu_custom_call.1} parent=71 // pred_check
          %p440 = pneg %p53
        $region74: #{tpu_custom_call.1} parent=71 // pred_check_branch
          %442 = sbr.rel (%p440) target = $region76
        $region75: #{tpu_custom_call.1} parent=71 // pred_region
          %443 = dma.done %s436, 128
        $region76: #{tpu_custom_call.1} parent=71 // pred_fallthru
          _
        // Predicated region
        $region77: #{tpu_custom_call.1} parent=71 // pred_check
          %p444 = pneg %p158
        $region78: #{tpu_custom_call.1} parent=71 // pred_check_branch
          %446 = sbr.rel (%p444) target = $region80
        $region79: #{tpu_custom_call.1} parent=71 // pred_region
          %447 = dma.done [#allocation7], 16
        $region80: #{tpu_custom_call.1} parent=71 // pred_fallthru
          _
        // Predicated region
        $region81: #{tpu_custom_call.1} parent=71 // pred_check
          %p448 = pneg %p179
        $region82: #{tpu_custom_call.1} parent=71 // pred_check_branch
          %450 = sbr.rel (%p448) target = $region84
        $region83: #{tpu_custom_call.1} parent=71 // pred_region
          %451 = dma.done [#allocation7], 16
        $region84: #{tpu_custom_call.1} parent=71 // pred_fallthru
          _
        // Predicated region
        $region85: #{tpu_custom_call.1} parent=71 // pred_check
          %p452 = pneg %p221
        $region86: #{tpu_custom_call.1} parent=71 // pred_check_branch
          %454 = sbr.rel (%p452) target = $region88
        $region87: #{tpu_custom_call.1} parent=71 // pred_region
          %455 = dma.done [#allocation10], 16
        $region88: #{tpu_custom_call.1} parent=71 // pred_fallthru
          _
        %s456 = sand.u32 %s40, 1
        %s457 = scalar_lea.sflag [#allocation4], %s456
        %s458 = sand.u32 %s40, 1
        %s459 = smul.addr %s458, 8
        %s460 = scalar_lea.vmem [#allocation3], %s459
        %p461 = pneg %p53
        %p462 = pneg %p50
        %p463 = pneg %p74
        %p464 = pneg %p71
        %p465 = pneg %p95
        %p466 = pneg %p92
        %p467 = pneg %p116
        %p468 = pneg %p113
        %p469 = pneg %p137
        %p470 = pneg %p134
        %p471 = pneg %p158
        %p472 = pneg %p155
        %p473 = pneg %p179
        %p474 = pneg %p176
        %p475 = pneg %p200
        %p476 = pneg %p197
        %p477 = pneg %p221
        %p478 = pneg %p218
        %p479 = pneg %p242
        %p480 = pneg %p239
        %p481 = pneg %p263
        %p482 = pneg %p260
        %p483 = pneg %p284
        %p484 = pneg %p281
        %p485 = pneg %p305
        %p486 = pneg %p302
        %p487 = pneg %p331
        %p488 = pneg %p328
        %s489 = sand.u32 %s318, 1
        %s490 = scalar_lea.sflag [#allocation5], %s489
        %s491 = sand.u32 %s318, 1
        %s492 = smul.addr %s491, 8
        %s493 = scalar_lea.vmem [#allocation11], %s492
        %v494 = vld [vmem:[%s439] sm:$0xff]
        %v495 = vld [vmem:[%s1] sm:$0xff]
        %v496 = vld [vmem:[%s1 + $0x8] sm:$0xff]
        %v497 = vld [vmem:[%s1 + $0x10] sm:$0xff]
        %v498 = vld [vmem:[%s1 + $0x18] sm:$0xff]
        %v499 = vld [vmem:[%s2] sm:$0x1]
        %v501 = vlaneseq
        %v502 = vshrl.u32 %v501, 7
        %v503 = vsub.s32 0, %v502
        %v504 = vrot.slane %v499, %v503
        %vm506 = vcmask 261120
        %v508 = vsel %vm506, %v494, 0
        %510 = vmatprep.subr.mxu0 0.0
        %511 = vmatpush1.msra.mxu0 %v495
        %512 = vmatprep.subr.mxu0 0.0
        %513 = vmatpush1.msra.mxu0 %v496
        %514 = vmatprep.subr.mxu0 0.0
        %515 = vmatpush1.msra.mxu0 %v497
        %516 = vmatprep.subr.mxu0 0.0
        %517 = vmatpush1.msra.mxu0 %v498
        %518 = vmatprep.subr.mxu0 0.0
        %519 = vmatpush1.msra.mxu0 0.0
        %520 = vmatprep.subr.mxu0 0.0
        %521 = vmatpush1.msra.mxu0 0.0
        %522 = vmatprep.subr.mxu0 0.0
        %523 = vmatpush1.msra.mxu0 0.0
        %524 = vmatprep.subr.mxu0 0.0
        %525 = vmatpush1.msra.mxu0 0.0
        %526 = vmatprep.subr.mxu0 0.0
        %527 = vmatpush1.msra.mxu0 0.0
        %528 = vmatprep.subr.mxu0 0.0
        %529 = vmatpush1.msra.mxu0 0.0
        %530 = vmatprep.subr.mxu0 0.0
        %531 = vmatpush1.msra.mxu0 0.0
        %532 = vmatprep.subr.mxu0 0.0
        %533 = vmatpush1.msra.mxu0 0.0
        %534 = vmatprep.subr.mxu0 0.0
        %535 = vmatpush1.msra.mxu0 0.0
        %536 = vmatprep.subr.mxu0 0.0
        %537 = vmatpush1.msra.mxu0 0.0
        %538 = vmatprep.subr.mxu0 0.0
        %539 = vmatpush1.msra.mxu0 0.0
        %540 = vmatprep.subr.mxu0 0.0
        %541 = vmatpush1.msra.mxu0 0.0
        %542 = vmatprep.subr.mxu0 0.0
        %543 = vmatpush1.msra.mxu0 0.0
        %544 = vmatprep.subr.mxu0 0.0
        %545 = vmatpush1.msra.mxu0 0.0
        %546 = vmatprep.subr.mxu0 0.0
        %547 = vmatpush1.msra.mxu0 0.0
        %548 = vmatprep.subr.mxu0 0.0
        %549 = vmatpush1.msra.mxu0 0.0
        %550 = vmatprep.subr.mxu0 0.0
        %551 = vmatpush1.msra.mxu0 0.0
        %552 = vmatprep.subr.mxu0 0.0
        %553 = vmatpush1.msra.mxu0 0.0
        %554 = vmatprep.subr.mxu0 0.0
        %555 = vmatpush1.msra.mxu0 0.0
        %556 = vmatprep.subr.mxu0 0.0
        %557 = vmatpush1.msra.mxu0 0.0
        %558 = vmatprep.subr.mxu0 0.0
        %559 = vmatpush1.msra.mxu0 0.0
        %560 = vmatprep.subr.mxu0 0.0
        %561 = vmatpush1.msra.mxu0 0.0
        %562 = vmatprep.subr.mxu0 0.0
        %563 = vmatpush1.msra.mxu0 0.0
        %564 = vmatprep.subr.mxu0 0.0
        %565 = vmatpush1.msra.mxu0 0.0
        %566 = vmatprep.subr.mxu0 0.0
        %567 = vmatpush1.msra.mxu0 0.0
        %568 = vmatprep.subr.mxu0 0.0
        %569 = vmatpush1.msra.mxu0 0.0
        %570 = vmatprep.subr.mxu0 0.0
        %571 = vmatpush1.msra.mxu0 0.0
        %572 = vmatprep.subr.mxu0 0.0
        %573 = vmatpush1.msra.mxu0 0.0
        %574 = vmatprep.mubr.f32.mxu0 0.0
        %575 = vmatmul.mubr.f32.gmra.mrb[0].mxu0 %v508
        %v576 = vpop.f32.mrb[0].mxu0
        %v577 = vadd.f32 %v504, %v576
        %v578 = vpop.f32.mrb[0].mxu0
        %579 = vdwg.mxu0
        %581 = vrot.lane.b32.xlu0 %v577, 96
        %v582 = vpop.permute.xlu0 %581
        %vm583 = vcmask 64512
        %v584 = vsel %vm583, %v577, 0
        %v586 = vsel %vm583, %v582, 0
        %588 = vmatprep.subr.mxu0 0.0
        %589 = vmatpush1.xpose.msra.mxu0 %v586
        %590 = vmatprep.subr.mxu0 0.0
        %591 = vmatpush1.xpose.msra.mxu0 0.0
        %592 = vmatprep.subr.mxu0 0.0
        %593 = vmatpush1.xpose.msra.mxu0 0.0
        %594 = vmatprep.subr.mxu0 0.0
        %595 = vmatpush1.xpose.msra.mxu0 0.0
        %596 = vmatprep.subr.mxu0 0.0
        %597 = vmatpush1.xpose.msra.mxu0 0.0
        %598 = vmatprep.subr.mxu0 0.0
        %599 = vmatpush1.xpose.msra.mxu0 0.0
        %600 = vmatprep.subr.mxu0 0.0
        %601 = vmatpush1.xpose.msra.mxu0 0.0
        %602 = vmatprep.subr.mxu0 0.0
        %603 = vmatpush1.xpose.msra.mxu0 0.0
        %604 = vmatprep.subr.mxu0 0.0
        %605 = vmatpush1.xpose.msra.mxu0 0.0
        %606 = vmatprep.subr.mxu0 0.0
        %607 = vmatpush1.xpose.msra.mxu0 0.0
        %608 = vmatprep.subr.mxu0 0.0
        %609 = vmatpush1.xpose.msra.mxu0 0.0
        %610 = vmatprep.subr.mxu0 0.0
        %611 = vmatpush1.xpose.msra.mxu0 0.0
        %612 = vmatprep.subr.mxu0 0.0
        %613 = vmatpush1.xpose.msra.mxu0 0.0
        %614 = vmatprep.subr.mxu0 0.0
        %615 = vmatpush1.xpose.msra.mxu0 0.0
        %616 = vmatprep.subr.mxu0 0.0
        %617 = vmatpush1.xpose.msra.mxu0 0.0
        %618 = vmatprep.subr.mxu0 0.0
        %619 = vmatpush1.xpose.msra.mxu0 0.0
        %620 = vmatprep.subr.mxu0 0.0
        %621 = vmatpush1.xpose.msra.mxu0 0.0
        %622 = vmatprep.subr.mxu0 0.0
        %623 = vmatpush1.xpose.msra.mxu0 0.0
        %624 = vmatprep.subr.mxu0 0.0
        %625 = vmatpush1.xpose.msra.mxu0 0.0
        %626 = vmatprep.subr.mxu0 0.0
        %627 = vmatpush1.xpose.msra.mxu0 0.0
        %628 = vmatprep.subr.mxu0 0.0
        %629 = vmatpush1.xpose.msra.mxu0 0.0
        %630 = vmatprep.subr.mxu0 0.0
        %631 = vmatpush1.xpose.msra.mxu0 0.0
        %632 = vmatprep.subr.mxu0 0.0
        %633 = vmatpush1.xpose.msra.mxu0 0.0
        %634 = vmatprep.subr.mxu0 0.0
        %635 = vmatpush1.xpose.msra.mxu0 0.0
        %636 = vmatprep.subr.mxu0 0.0
        %637 = vmatpush1.xpose.msra.mxu0 0.0
        %638 = vmatprep.subr.mxu0 0.0
        %639 = vmatpush1.xpose.msra.mxu0 0.0
        %640 = vmatprep.subr.mxu0 0.0
        %641 = vmatpush1.xpose.msra.mxu0 0.0
        %642 = vmatprep.subr.mxu0 0.0
        %643 = vmatpush1.xpose.msra.mxu0 0.0
        %644 = vmatprep.subr.mxu0 0.0
        %645 = vmatpush1.xpose.msra.mxu0 0.0
        %646 = vmatprep.subr.mxu0 0.0
        %647 = vmatpush1.xpose.msra.mxu0 0.0
        %648 = vmatprep.subr.mxu0 0.0
        %649 = vmatpush1.xpose.msra.mxu0 0.0
        %650 = vmatprep.subr.mxu0 0.0
        %651 = vmatpush1.xpose.msra.mxu0 0.0
        %652 = vmatprep.mubr.f32.mxu0 0.0
        %653 = vmatmul.mubr.f32.gmra.mrb[0].mxu0 %v584
        %v654 = vpop.f32.mrb[0].mxu0
        %v655 = vadd.f32 0.0, %v654
        %v656 = vpop.f32.mrb[0].mxu0
        %657 = vdwg.mxu0
        %v658 = vsel %vm583, %v655, -inf
        %659 = vmax.xlane.f32.xlu0 %v658
        %v660 = vpop.xlane.xlu0 %659
        %v661 = vsub.f32 %v655, %v660
        %v662 = vmul.f32 %v661, 1.442695
        %v663 = vpow.pop %v662
        %v664 = vsel %vm583, %v663, 0.0
        %665 = vadd.xlane.f32.xlu0 %v664
        %v666 = vpop.xlane.xlu0 %665
        %v667 = vrcp.pop %v666
        %v668 = vmul.f32 %v663, %v667
        %669 = vrot.lane.b32.xlu0 %v577, 64
        %v670 = vpop.permute.xlu0 %669
        %v673 = vsel %vm583, %v668, 0
        %675 = vmatprep.subr.mxu0 0.0
        %676 = vmatpush1.msra.mxu0 %v670
        %677 = vmatprep.subr.mxu0 0.0
        %678 = vmatpush1.msra.mxu0 0.0
        %679 = vmatprep.subr.mxu0 0.0
        %680 = vmatpush1.msra.mxu0 0.0
        %681 = vmatprep.subr.mxu0 0.0
        %682 = vmatpush1.msra.mxu0 0.0
        %683 = vmatprep.subr.mxu0 0.0
        %684 = vmatpush1.msra.mxu0 0.0
        %685 = vmatprep.subr.mxu0 0.0
        %686 = vmatpush1.msra.mxu0 0.0
        %687 = vmatprep.subr.mxu0 0.0
        %688 = vmatpush1.msra.mxu0 0.0
        %689 = vmatprep.subr.mxu0 0.0
        %690 = vmatpush1.msra.mxu0 0.0
        %691 = vmatprep.subr.mxu0 0.0
        %692 = vmatpush1.msra.mxu0 0.0
        %693 = vmatprep.subr.mxu0 0.0
        %694 = vmatpush1.msra.mxu0 0.0
        %695 = vmatprep.subr.mxu0 0.0
        %696 = vmatpush1.msra.mxu0 0.0
        %697 = vmatprep.subr.mxu0 0.0
        %698 = vmatpush1.msra.mxu0 0.0
        %699 = vmatprep.subr.mxu0 0.0
        %700 = vmatpush1.msra.mxu0 0.0
        %701 = vmatprep.subr.mxu0 0.0
        %702 = vmatpush1.msra.mxu0 0.0
        %703 = vmatprep.subr.mxu0 0.0
        %704 = vmatpush1.msra.mxu0 0.0
        %705 = vmatprep.subr.mxu0 0.0
        %706 = vmatpush1.msra.mxu0 0.0
        %707 = vmatprep.subr.mxu0 0.0
        %708 = vmatpush1.msra.mxu0 0.0
        %709 = vmatprep.subr.mxu0 0.0
        %710 = vmatpush1.msra.mxu0 0.0
        %711 = vmatprep.subr.mxu0 0.0
        %712 = vmatpush1.msra.mxu0 0.0
        %713 = vmatprep.subr.mxu0 0.0
        %714 = vmatpush1.msra.mxu0 0.0
        %715 = vmatprep.subr.mxu0 0.0
        %716 = vmatpush1.msra.mxu0 0.0
        %717 = vmatprep.subr.mxu0 0.0
        %718 = vmatpush1.msra.mxu0 0.0
        %719 = vmatprep.subr.mxu0 0.0
        %720 = vmatpush1.msra.mxu0 0.0
        %721 = vmatprep.subr.mxu0 0.0
        %722 = vmatpush1.msra.mxu0 0.0
        %723 = vmatprep.subr.mxu0 0.0
        %724 = vmatpush1.msra.mxu0 0.0
        %725 = vmatprep.subr.mxu0 0.0
        %726 = vmatpush1.msra.mxu0 0.0
        %727 = vmatprep.subr.mxu0 0.0
        %728 = vmatpush1.msra.mxu0 0.0
        %729 = vmatprep.subr.mxu0 0.0
        %730 = vmatpush1.msra.mxu0 0.0
        %731 = vmatprep.subr.mxu0 0.0
        %732 = vmatpush1.msra.mxu0 0.0
        %733 = vmatprep.subr.mxu0 0.0
        %734 = vmatpush1.msra.mxu0 0.0
        %735 = vmatprep.subr.mxu0 0.0
        %736 = vmatpush1.msra.mxu0 0.0
        %737 = vmatprep.subr.mxu0 0.0
        %738 = vmatpush1.msra.mxu0 0.0
        %739 = vmatprep.mubr.f32.mxu0 0.0
        %740 = vmatmul.mubr.f32.gmra.mrb[0].mxu0 %v673
        %v741 = vpop.f32.mrb[0].mxu0
        %v742 = vadd.f32 0.0, %v741
        %v743 = vpop.f32.mrb[0].mxu0
        %744 = vdwg.mxu0
        %745 = vst.msk [vmem:[#allocation2] sm:$0xff] %vm583, %v742
        %746 = vrot.lane.b32.xlu0 %v577, 120
        %v747 = vpop.permute.xlu0 %746
        %748 = vrot.lane.b32.xlu0 %v577, 88
        %v749 = vpop.permute.xlu0 %748
        %v750 = vsel %vm583, %v747, 0
        %v752 = vsel %vm583, %v749, 0
        %754 = vmatprep.subr.mxu0 0.0
        %755 = vmatpush1.xpose.msra.mxu0 %v752
        %756 = vmatprep.subr.mxu0 0.0
        %757 = vmatpush1.xpose.msra.mxu0 0.0
        %758 = vmatprep.subr.mxu0 0.0
        %759 = vmatpush1.xpose.msra.mxu0 0.0
        %760 = vmatprep.subr.mxu0 0.0
        %761 = vmatpush1.xpose.msra.mxu0 0.0
        %762 = vmatprep.subr.mxu0 0.0
        %763 = vmatpush1.xpose.msra.mxu0 0.0
        %764 = vmatprep.subr.mxu0 0.0
        %765 = vmatpush1.xpose.msra.mxu0 0.0
        %766 = vmatprep.subr.mxu0 0.0
        %767 = vmatpush1.xpose.msra.mxu0 0.0
        %768 = vmatprep.subr.mxu0 0.0
        %769 = vmatpush1.xpose.msra.mxu0 0.0
        %770 = vmatprep.subr.mxu0 0.0
        %771 = vmatpush1.xpose.msra.mxu0 0.0
        %772 = vmatprep.subr.mxu0 0.0
        %773 = vmatpush1.xpose.msra.mxu0 0.0
        %774 = vmatprep.subr.mxu0 0.0
        %775 = vmatpush1.xpose.msra.mxu0 0.0
        %776 = vmatprep.subr.mxu0 0.0
        %777 = vmatpush1.xpose.msra.mxu0 0.0
        %778 = vmatprep.subr.mxu0 0.0
        %779 = vmatpush1.xpose.msra.mxu0 0.0
        %780 = vmatprep.subr.mxu0 0.0
        %781 = vmatpush1.xpose.msra.mxu0 0.0
        %782 = vmatprep.subr.mxu0 0.0
        %783 = vmatpush1.xpose.msra.mxu0 0.0
        %784 = vmatprep.subr.mxu0 0.0
        %785 = vmatpush1.xpose.msra.mxu0 0.0
        %786 = vmatprep.subr.mxu0 0.0
        %787 = vmatpush1.xpose.msra.mxu0 0.0
        %788 = vmatprep.subr.mxu0 0.0
        %789 = vmatpush1.xpose.msra.mxu0 0.0
        %790 = vmatprep.subr.mxu0 0.0
        %791 = vmatpush1.xpose.msra.mxu0 0.0
        %792 = vmatprep.subr.mxu0 0.0
        %793 = vmatpush1.xpose.msra.mxu0 0.0
        %794 = vmatprep.subr.mxu0 0.0
        %795 = vmatpush1.xpose.msra.mxu0 0.0
        %796 = vmatprep.subr.mxu0 0.0
        %797 = vmatpush1.xpose.msra.mxu0 0.0
        %798 = vmatprep.subr.mxu0 0.0
        %799 = vmatpush1.xpose.msra.mxu0 0.0
        %800 = vmatprep.subr.mxu0 0.0
        %801 = vmatpush1.xpose.msra.mxu0 0.0
        %802 = vmatprep.subr.mxu0 0.0
        %803 = vmatpush1.xpose.msra.mxu0 0.0
        %804 = vmatprep.subr.mxu0 0.0
        %805 = vmatpush1.xpose.msra.mxu0 0.0
        %806 = vmatprep.subr.mxu0 0.0
        %807 = vmatpush1.xpose.msra.mxu0 0.0
        %808 = vmatprep.subr.mxu0 0.0
        %809 = vmatpush1.xpose.msra.mxu0 0.0
        %810 = vmatprep.subr.mxu0 0.0
        %811 = vmatpush1.xpose.msra.mxu0 0.0
        %812 = vmatprep.subr.mxu0 0.0
        %813 = vmatpush1.xpose.msra.mxu0 0.0
        %814 = vmatprep.subr.mxu0 0.0
        %815 = vmatpush1.xpose.msra.mxu0 0.0
        %816 = vmatprep.subr.mxu0 0.0
        %817 = vmatpush1.xpose.msra.mxu0 0.0
        %818 = vmatprep.mubr.f32.mxu0 0.0
        %819 = vmatmul.mubr.f32.gmra.mrb[0].mxu0 %v750
        %v820 = vpop.f32.mrb[0].mxu0
        %v821 = vadd.f32 0.0, %v820
        %v822 = vpop.f32.mrb[0].mxu0
        %823 = vdwg.mxu0
        %v824 = vsel %vm583, %v821, -inf
        %825 = vmax.xlane.f32.xlu0 %v824
        %v826 = vpop.xlane.xlu0 %825
        %v827 = vsub.f32 %v821, %v826
        %v828 = vmul.f32 %v827, 1.442695
        %v829 = vpow.pop %v828
        %v830 = vsel %vm583, %v829, 0.0
        %831 = vadd.xlane.f32.xlu0 %v830
        %v832 = vpop.xlane.xlu0 %831
        %v833 = vrcp.pop %v832
        %v834 = vmul.f32 %v829, %v833
        %835 = vrot.lane.b32.xlu0 %v577, 56
        %v836 = vpop.permute.xlu0 %835
        %v839 = vsel %vm583, %v834, 0
        %841 = vmatprep.subr.mxu0 0.0
        %842 = vmatpush1.msra.mxu0 %v836
        %843 = vmatprep.subr.mxu0 0.0
        %844 = vmatpush1.msra.mxu0 0.0
        %845 = vmatprep.subr.mxu0 0.0
        %846 = vmatpush1.msra.mxu0 0.0
        %847 = vmatprep.subr.mxu0 0.0
        %848 = vmatpush1.msra.mxu0 0.0
        %849 = vmatprep.subr.mxu0 0.0
        %850 = vmatpush1.msra.mxu0 0.0
        %851 = vmatprep.subr.mxu0 0.0
        %852 = vmatpush1.msra.mxu0 0.0
        %853 = vmatprep.subr.mxu0 0.0
        %854 = vmatpush1.msra.mxu0 0.0
        %855 = vmatprep.subr.mxu0 0.0
        %856 = vmatpush1.msra.mxu0 0.0
        %857 = vmatprep.subr.mxu0 0.0
        %858 = vmatpush1.msra.mxu0 0.0
        %859 = vmatprep.subr.mxu0 0.0
        %860 = vmatpush1.msra.mxu0 0.0
        %861 = vmatprep.subr.mxu0 0.0
        %862 = vmatpush1.msra.mxu0 0.0
        %863 = vmatprep.subr.mxu0 0.0
        %864 = vmatpush1.msra.mxu0 0.0
        %865 = vmatprep.subr.mxu0 0.0
        %866 = vmatpush1.msra.mxu0 0.0
        %867 = vmatprep.subr.mxu0 0.0
        %868 = vmatpush1.msra.mxu0 0.0
        %869 = vmatprep.subr.mxu0 0.0
        %870 = vmatpush1.msra.mxu0 0.0
        %871 = vmatprep.subr.mxu0 0.0
        %872 = vmatpush1.msra.mxu0 0.0
        %873 = vmatprep.subr.mxu0 0.0
        %874 = vmatpush1.msra.mxu0 0.0
        %875 = vmatprep.subr.mxu0 0.0
        %876 = vmatpush1.msra.mxu0 0.0
        %877 = vmatprep.subr.mxu0 0.0
        %878 = vmatpush1.msra.mxu0 0.0
        %879 = vmatprep.subr.mxu0 0.0
        %880 = vmatpush1.msra.mxu0 0.0
        %881 = vmatprep.subr.mxu0 0.0
        %882 = vmatpush1.msra.mxu0 0.0
        %883 = vmatprep.subr.mxu0 0.0
        %884 = vmatpush1.msra.mxu0 0.0
        %885 = vmatprep.subr.mxu0 0.0
        %886 = vmatpush1.msra.mxu0 0.0
        %887 = vmatprep.subr.mxu0 0.0
        %888 = vmatpush1.msra.mxu0 0.0
        %889 = vmatprep.subr.mxu0 0.0
        %890 = vmatpush1.msra.mxu0 0.0
        %891 = vmatprep.subr.mxu0 0.0
        %892 = vmatpush1.msra.mxu0 0.0
        %893 = vmatprep.subr.mxu0 0.0
        %894 = vmatpush1.msra.mxu0 0.0
        %895 = vmatprep.subr.mxu0 0.0
        %896 = vmatpush1.msra.mxu0 0.0
        %897 = vmatprep.subr.mxu0 0.0
        %898 = vmatpush1.msra.mxu0 0.0
        %899 = vmatprep.subr.mxu0 0.0
        %900 = vmatpush1.msra.mxu0 0.0
        %901 = vmatprep.subr.mxu0 0.0
        %902 = vmatpush1.msra.mxu0 0.0
        %903 = vmatprep.subr.mxu0 0.0
        %904 = vmatpush1.msra.mxu0 0.0
        %905 = vmatprep.mubr.f32.mxu0 0.0
        %906 = vmatmul.mubr.f32.gmra.mrb[0].mxu0 %v839
        %v907 = vpop.f32.mrb[0].mxu0
        %v908 = vadd.f32 0.0, %v907
        %v909 = vpop.f32.mrb[0].mxu0
        %910 = vdwg.mxu0
        %912 = vrot.lane.b32.xlu0 %v908, 8
        %v913 = vpop.permute.xlu0 %912
        %vm915 = vcmask 130112
        %916 = vst.msk [vmem:[#allocation2] sm:$0xff] %vm915, %v913
        %917 = vrot.lane.b32.xlu0 %v577, 112
        %v918 = vpop.permute.xlu0 %917
        %919 = vrot.lane.b32.xlu0 %v577, 80
        %v920 = vpop.permute.xlu0 %919
        %v921 = vsel %vm583, %v918, 0
        %v923 = vsel %vm583, %v920, 0
        %925 = vmatprep.subr.mxu0 0.0
        %926 = vmatpush1.xpose.msra.mxu0 %v923
        %927 = vmatprep.subr.mxu0 0.0
        %928 = vmatpush1.xpose.msra.mxu0 0.0
        %929 = vmatprep.subr.mxu0 0.0
        %930 = vmatpush1.xpose.msra.mxu0 0.0
        %931 = vmatprep.subr.mxu0 0.0
        %932 = vmatpush1.xpose.msra.mxu0 0.0
        %933 = vmatprep.subr.mxu0 0.0
        %934 = vmatpush1.xpose.msra.mxu0 0.0
        %935 = vmatprep.subr.mxu0 0.0
        %936 = vmatpush1.xpose.msra.mxu0 0.0
        %937 = vmatprep.subr.mxu0 0.0
        %938 = vmatpush1.xpose.msra.mxu0 0.0
        %939 = vmatprep.subr.mxu0 0.0
        %940 = vmatpush1.xpose.msra.mxu0 0.0
        %941 = vmatprep.subr.mxu0 0.0
        %942 = vmatpush1.xpose.msra.mxu0 0.0
        %943 = vmatprep.subr.mxu0 0.0
        %944 = vmatpush1.xpose.msra.mxu0 0.0
        %945 = vmatprep.subr.mxu0 0.0
        %946 = vmatpush1.xpose.msra.mxu0 0.0
        %947 = vmatprep.subr.mxu0 0.0
        %948 = vmatpush1.xpose.msra.mxu0 0.0
        %949 = vmatprep.subr.mxu0 0.0
        %950 = vmatpush1.xpose.msra.mxu0 0.0
        %951 = vmatprep.subr.mxu0 0.0
        %952 = vmatpush1.xpose.msra.mxu0 0.0
        %953 = vmatprep.subr.mxu0 0.0
        %954 = vmatpush1.xpose.msra.mxu0 0.0
        %955 = vmatprep.subr.mxu0 0.0
        %956 = vmatpush1.xpose.msra.mxu0 0.0
        %957 = vmatprep.subr.mxu0 0.0
        %958 = vmatpush1.xpose.msra.mxu0 0.0
        %959 = vmatprep.subr.mxu0 0.0
        %960 = vmatpush1.xpose.msra.mxu0 0.0
        %961 = vmatprep.subr.mxu0 0.0
        %962 = vmatpush1.xpose.msra.mxu0 0.0
        %963 = vmatprep.subr.mxu0 0.0
        %964 = vmatpush1.xpose.msra.mxu0 0.0
        %965 = vmatprep.subr.mxu0 0.0
        %966 = vmatpush1.xpose.msra.mxu0 0.0
        %967 = vmatprep.subr.mxu0 0.0
        %968 = vmatpush1.xpose.msra.mxu0 0.0
        %969 = vmatprep.subr.mxu0 0.0
        %970 = vmatpush1.xpose.msra.mxu0 0.0
        %971 = vmatprep.subr.mxu0 0.0
        %972 = vmatpush1.xpose.msra.mxu0 0.0
        %973 = vmatprep.subr.mxu0 0.0
        %974 = vmatpush1.xpose.msra.mxu0 0.0
        %975 = vmatprep.subr.mxu0 0.0
        %976 = vmatpush1.xpose.msra.mxu0 0.0
        %977 = vmatprep.subr.mxu0 0.0
        %978 = vmatpush1.xpose.msra.mxu0 0.0
        %979 = vmatprep.subr.mxu0 0.0
        %980 = vmatpush1.xpose.msra.mxu0 0.0
        %981 = vmatprep.subr.mxu0 0.0
        %982 = vmatpush1.xpose.msra.mxu0 0.0
        %983 = vmatprep.subr.mxu0 0.0
        %984 = vmatpush1.xpose.msra.mxu0 0.0
        %985 = vmatprep.subr.mxu0 0.0
        %986 = vmatpush1.xpose.msra.mxu0 0.0
        %987 = vmatprep.subr.mxu0 0.0
        %988 = vmatpush1.xpose.msra.mxu0 0.0
        %989 = vmatprep.mubr.f32.mxu0 0.0
        %990 = vmatmul.mubr.f32.gmra.mrb[0].mxu0 %v921
        %v991 = vpop.f32.mrb[0].mxu0
        %v992 = vadd.f32 0.0, %v991
        %v993 = vpop.f32.mrb[0].mxu0
        %994 = vdwg.mxu0
        %v995 = vsel %vm583, %v992, -inf
        %996 = vmax.xlane.f32.xlu0 %v995
        %v997 = vpop.xlane.xlu0 %996
        %v998 = vsub.f32 %v992, %v997
        %v999 = vmul.f32 %v998, 1.442695
        %v1000 = vpow.pop %v999
        %v1001 = vsel %vm583, %v1000, 0.0
        %1002 = vadd.xlane.f32.xlu0 %v1001
        %v1003 = vpop.xlane.xlu0 %1002
        %v1004 = vrcp.pop %v1003
        %v1005 = vmul.f32 %v1000, %v1004
        %1006 = vrot.lane.b32.xlu0 %v577, 48
        %v1007 = vpop.permute.xlu0 %1006
        %v1010 = vsel %vm583, %v1005, 0
        %1012 = vmatprep.subr.mxu0 0.0
        %1013 = vmatpush1.msra.mxu0 %v1007
        %1014 = vmatprep.subr.mxu0 0.0
        %1015 = vmatpush1.msra.mxu0 0.0
        %1016 = vmatprep.subr.mxu0 0.0
        %1017 = vmatpush1.msra.mxu0 0.0
        %1018 = vmatprep.subr.mxu0 0.0
        %1019 = vmatpush1.msra.mxu0 0.0
        %1020 = vmatprep.subr.mxu0 0.0
        %1021 = vmatpush1.msra.mxu0 0.0
        %1022 = vmatprep.subr.mxu0 0.0
        %1023 = vmatpush1.msra.mxu0 0.0
        %1024 = vmatprep.subr.mxu0 0.0
        %1025 = vmatpush1.msra.mxu0 0.0
        %1026 = vmatprep.subr.mxu0 0.0
        %1027 = vmatpush1.msra.mxu0 0.0
        %1028 = vmatprep.subr.mxu0 0.0
        %1029 = vmatpush1.msra.mxu0 0.0
        %1030 = vmatprep.subr.mxu0 0.0
        %1031 = vmatpush1.msra.mxu0 0.0
        %1032 = vmatprep.subr.mxu0 0.0
        %1033 = vmatpush1.msra.mxu0 0.0
        %1034 = vmatprep.subr.mxu0 0.0
        %1035 = vmatpush1.msra.mxu0 0.0
        %1036 = vmatprep.subr.mxu0 0.0
        %1037 = vmatpush1.msra.mxu0 0.0
        %1038 = vmatprep.subr.mxu0 0.0
        %1039 = vmatpush1.msra.mxu0 0.0
        %1040 = vmatprep.subr.mxu0 0.0
        %1041 = vmatpush1.msra.mxu0 0.0
        %1042 = vmatprep.subr.mxu0 0.0
        %1043 = vmatpush1.msra.mxu0 0.0
        %1044 = vmatprep.subr.mxu0 0.0
        %1045 = vmatpush1.msra.mxu0 0.0
        %1046 = vmatprep.subr.mxu0 0.0
        %1047 = vmatpush1.msra.mxu0 0.0
        %1048 = vmatprep.subr.mxu0 0.0
        %1049 = vmatpush1.msra.mxu0 0.0
        %1050 = vmatprep.subr.mxu0 0.0
        %1051 = vmatpush1.msra.mxu0 0.0
        %1052 = vmatprep.subr.mxu0 0.0
        %1053 = vmatpush1.msra.mxu0 0.0
        %1054 = vmatprep.subr.mxu0 0.0
        %1055 = vmatpush1.msra.mxu0 0.0
        %1056 = vmatprep.subr.mxu0 0.0
        %1057 = vmatpush1.msra.mxu0 0.0
        %1058 = vmatprep.subr.mxu0 0.0
        %1059 = vmatpush1.msra.mxu0 0.0
        %1060 = vmatprep.subr.mxu0 0.0
        %1061 = vmatpush1.msra.mxu0 0.0
        %1062 = vmatprep.subr.mxu0 0.0
        %1063 = vmatpush1.msra.mxu0 0.0
        %1064 = vmatprep.subr.mxu0 0.0
        %1065 = vmatpush1.msra.mxu0 0.0
        %1066 = vmatprep.subr.mxu0 0.0
        %1067 = vmatpush1.msra.mxu0 0.0
        %1068 = vmatprep.subr.mxu0 0.0
        %1069 = vmatpush1.msra.mxu0 0.0
        %1070 = vmatprep.subr.mxu0 0.0
        %1071 = vmatpush1.msra.mxu0 0.0
        %1072 = vmatprep.subr.mxu0 0.0
        %1073 = vmatpush1.msra.mxu0 0.0
        %1074 = vmatprep.subr.mxu0 0.0
        %1075 = vmatpush1.msra.mxu0 0.0
        %1076 = vmatprep.mubr.f32.mxu0 0.0
        %1077 = vmatmul.mubr.f32.gmra.mrb[0].mxu0 %v1010
        %v1078 = vpop.f32.mrb[0].mxu0
        %v1079 = vadd.f32 0.0, %v1078
        %v1080 = vpop.f32.mrb[0].mxu0
        %1081 = vdwg.mxu0
        %1083 = vrot.lane.b32.xlu0 %v1079, 16
        %v1084 = vpop.permute.xlu0 %1083
        %vm1086 = vcmask 195712
        %1087 = vst.msk [vmem:[#allocation2] sm:$0xff] %vm1086, %v1084
        %1088 = vrot.lane.b32.xlu0 %v577, 104
        %v1089 = vpop.permute.xlu0 %1088
        %1090 = vrot.lane.b32.xlu0 %v577, 72
        %v1091 = vpop.permute.xlu0 %1090
        %v1092 = vsel %vm583, %v1089, 0
        %v1094 = vsel %vm583, %v1091, 0
        %1096 = vmatprep.subr.mxu0 0.0
        %1097 = vmatpush1.xpose.msra.mxu0 %v1094
        %1098 = vmatprep.subr.mxu0 0.0
        %1099 = vmatpush1.xpose.msra.mxu0 0.0
        %1100 = vmatprep.subr.mxu0 0.0
        %1101 = vmatpush1.xpose.msra.mxu0 0.0
        %1102 = vmatprep.subr.mxu0 0.0
        %1103 = vmatpush1.xpose.msra.mxu0 0.0
        %1104 = vmatprep.subr.mxu0 0.0
        %1105 = vmatpush1.xpose.msra.mxu0 0.0
        %1106 = vmatprep.subr.mxu0 0.0
        %1107 = vmatpush1.xpose.msra.mxu0 0.0
        %1108 = vmatprep.subr.mxu0 0.0
        %1109 = vmatpush1.xpose.msra.mxu0 0.0
        %1110 = vmatprep.subr.mxu0 0.0
        %1111 = vmatpush1.xpose.msra.mxu0 0.0
        %1112 = vmatprep.subr.mxu0 0.0
        %1113 = vmatpush1.xpose.msra.mxu0 0.0
        %1114 = vmatprep.subr.mxu0 0.0
        %1115 = vmatpush1.xpose.msra.mxu0 0.0
        %1116 = vmatprep.subr.mxu0 0.0
        %1117 = vmatpush1.xpose.msra.mxu0 0.0
        %1118 = vmatprep.subr.mxu0 0.0
        %1119 = vmatpush1.xpose.msra.mxu0 0.0
        %1120 = vmatprep.subr.mxu0 0.0
        %1121 = vmatpush1.xpose.msra.mxu0 0.0
        %1122 = vmatprep.subr.mxu0 0.0
        %1123 = vmatpush1.xpose.msra.mxu0 0.0
        %1124 = vmatprep.subr.mxu0 0.0
        %1125 = vmatpush1.xpose.msra.mxu0 0.0
        %1126 = vmatprep.subr.mxu0 0.0
        %1127 = vmatpush1.xpose.msra.mxu0 0.0
        %1128 = vmatprep.subr.mxu0 0.0
        %1129 = vmatpush1.xpose.msra.mxu0 0.0
        %1130 = vmatprep.subr.mxu0 0.0
        %1131 = vmatpush1.xpose.msra.mxu0 0.0
        %1132 = vmatprep.subr.mxu0 0.0
        %1133 = vmatpush1.xpose.msra.mxu0 0.0
        %1134 = vmatprep.subr.mxu0 0.0
        %1135 = vmatpush1.xpose.msra.mxu0 0.0
        %1136 = vmatprep.subr.mxu0 0.0
        %1137 = vmatpush1.xpose.msra.mxu0 0.0
        %1138 = vmatprep.subr.mxu0 0.0
        %1139 = vmatpush1.xpose.msra.mxu0 0.0
        %1140 = vmatprep.subr.mxu0 0.0
        %1141 = vmatpush1.xpose.msra.mxu0 0.0
        %1142 = vmatprep.subr.mxu0 0.0
        %1143 = vmatpush1.xpose.msra.mxu0 0.0
        %1144 = vmatprep.subr.mxu0 0.0
        %1145 = vmatpush1.xpose.msra.mxu0 0.0
        %1146 = vmatprep.subr.mxu0 0.0
        %1147 = vmatpush1.xpose.msra.mxu0 0.0
        %1148 = vmatprep.subr.mxu0 0.0
        %1149 = vmatpush1.xpose.msra.mxu0 0.0
        %1150 = vmatprep.subr.mxu0 0.0
        %1151 = vmatpush1.xpose.msra.mxu0 0.0
        %1152 = vmatprep.subr.mxu0 0.0
        %1153 = vmatpush1.xpose.msra.mxu0 0.0
        %1154 = vmatprep.subr.mxu0 0.0
        %1155 = vmatpush1.xpose.msra.mxu0 0.0
        %1156 = vmatprep.subr.mxu0 0.0
        %1157 = vmatpush1.xpose.msra.mxu0 0.0
        %1158 = vmatprep.subr.mxu0 0.0
        %1159 = vmatpush1.xpose.msra.mxu0 0.0
        %1160 = vmatprep.mubr.f32.mxu0 0.0
        %1161 = vmatmul.mubr.f32.gmra.mrb[0].mxu0 %v1092
        %v1162 = vpop.f32.mrb[0].mxu0
        %v1163 = vadd.f32 0.0, %v1162
        %v1164 = vpop.f32.mrb[0].mxu0
        %1165 = vdwg.mxu0
        %v1166 = vsel %vm583, %v1163, -inf
        %1167 = vmax.xlane.f32.xlu0 %v1166
        %v1168 = vpop.xlane.xlu0 %1167
        %v1169 = vsub.f32 %v1163, %v1168
        %v1170 = vmul.f32 %v1169, 1.442695
        %v1171 = vpow.pop %v1170
        %v1172 = vsel %vm583, %v1171, 0.0
        %1173 = vadd.xlane.f32.xlu0 %v1172
        %v1174 = vpop.xlane.xlu0 %1173
        %v1175 = vrcp.pop %v1174
        %v1176 = vmul.f32 %v1171, %v1175
        %1177 = vrot.lane.b32.xlu0 %v577, 40
        %v1178 = vpop.permute.xlu0 %1177
        %v1181 = vsel %vm583, %v1176, 0
        %1183 = vmatprep.subr.mxu0 0.0
        %1184 = vmatpush1.msra.mxu0 %v1178
        %1185 = vmatprep.subr.mxu0 0.0
        %1186 = vmatpush1.msra.mxu0 0.0
        %1187 = vmatprep.subr.mxu0 0.0
        %1188 = vmatpush1.msra.mxu0 0.0
        %1189 = vmatprep.subr.mxu0 0.0
        %1190 = vmatpush1.msra.mxu0 0.0
        %1191 = vmatprep.subr.mxu0 0.0
        %1192 = vmatpush1.msra.mxu0 0.0
        %1193 = vmatprep.subr.mxu0 0.0
        %1194 = vmatpush1.msra.mxu0 0.0
        %1195 = vmatprep.subr.mxu0 0.0
        %1196 = vmatpush1.msra.mxu0 0.0
        %1197 = vmatprep.subr.mxu0 0.0
        %1198 = vmatpush1.msra.mxu0 0.0
        %1199 = vmatprep.subr.mxu0 0.0
        %1200 = vmatpush1.msra.mxu0 0.0
        %1201 = vmatprep.subr.mxu0 0.0
        %1202 = vmatpush1.msra.mxu0 0.0
        %1203 = vmatprep.subr.mxu0 0.0
        %1204 = vmatpush1.msra.mxu0 0.0
        %1205 = vmatprep.subr.mxu0 0.0
        %1206 = vmatpush1.msra.mxu0 0.0
        %1207 = vmatprep.subr.mxu0 0.0
        %1208 = vmatpush1.msra.mxu0 0.0
        %1209 = vmatprep.subr.mxu0 0.0
        %1210 = vmatpush1.msra.mxu0 0.0
        %1211 = vmatprep.subr.mxu0 0.0
        %1212 = vmatpush1.msra.mxu0 0.0
        %1213 = vmatprep.subr.mxu0 0.0
        %1214 = vmatpush1.msra.mxu0 0.0
        %1215 = vmatprep.subr.mxu0 0.0
        %1216 = vmatpush1.msra.mxu0 0.0
        %1217 = vmatprep.subr.mxu0 0.0
        %1218 = vmatpush1.msra.mxu0 0.0
        %1219 = vmatprep.subr.mxu0 0.0
        %1220 = vmatpush1.msra.mxu0 0.0
        %1221 = vmatprep.subr.mxu0 0.0
        %1222 = vmatpush1.msra.mxu0 0.0
        %1223 = vmatprep.subr.mxu0 0.0
        %1224 = vmatpush1.msra.mxu0 0.0
        %1225 = vmatprep.subr.mxu0 0.0
        %1226 = vmatpush1.msra.mxu0 0.0
        %1227 = vmatprep.subr.mxu0 0.0
        %1228 = vmatpush1.msra.mxu0 0.0
        %1229 = vmatprep.subr.mxu0 0.0
        %1230 = vmatpush1.msra.mxu0 0.0
        %1231 = vmatprep.subr.mxu0 0.0
        %1232 = vmatpush1.msra.mxu0 0.0
        %1233 = vmatprep.subr.mxu0 0.0
        %1234 = vmatpush1.msra.mxu0 0.0
        %1235 = vmatprep.subr.mxu0 0.0
        %1236 = vmatpush1.msra.mxu0 0.0
        %1237 = vmatprep.subr.mxu0 0.0
        %1238 = vmatpush1.msra.mxu0 0.0
        %1239 = vmatprep.subr.mxu0 0.0
        %1240 = vmatpush1.msra.mxu0 0.0
        %1241 = vmatprep.subr.mxu0 0.0
        %1242 = vmatpush1.msra.mxu0 0.0
        %1243 = vmatprep.subr.mxu0 0.0
        %1244 = vmatpush1.msra.mxu0 0.0
        %1245 = vmatprep.subr.mxu0 0.0
        %1246 = vmatpush1.msra.mxu0 0.0
        %1247 = vmatprep.mubr.f32.mxu0 0.0
        %1248 = vmatmul.mubr.f32.gmra.mrb[0].mxu0 %v1181
        %v1249 = vpop.f32.mrb[0].mxu0
        %v1250 = vadd.f32 0.0, %v1249
        %v1251 = vpop.f32.mrb[0].mxu0
        %1252 = vdwg.mxu0
        %1254 = vrot.lane.b32.xlu0 %v1250, 24
        %v1255 = vpop.permute.xlu0 %1254
        %vm1257 = vcmask 261312
        %1258 = vst.msk [vmem:[#allocation2] sm:$0xff] %vm1257, %v1255
        %v1259 = vld [vmem:[#allocation2] sm:$0xff]
        %v1260 = vld [vmem:[%s3] sm:$0xff]
        %v1261 = vld [vmem:[%s3 + $0x8] sm:$0xff]
        %v1262 = vld [vmem:[%s3 + $0x10] sm:$0xff]
        %v1263 = vld [vmem:[%s3 + $0x18] sm:$0xff]
        %v1264 = vld [vmem:[%s4] sm:$0x1]
        %v1266 = vlaneseq
        %v1267 = vshrl.u32 %v1266, 7
        %v1268 = vsub.s32 0, %v1267
        %v1269 = vrot.slane %v1264, %v1268
        %v1272 = vsel %vm506, %v1259, 0
        %1274 = vmatprep.subr.mxu0 0.0
        %1275 = vmatpush1.msra.mxu0 %v1260
        %1276 = vmatprep.subr.mxu0 0.0
        %1277 = vmatpush1.msra.mxu0 %v1261
        %1278 = vmatprep.subr.mxu0 0.0
        %1279 = vmatpush1.msra.mxu0 %v1262
        %1280 = vmatprep.subr.mxu0 0.0
        %1281 = vmatpush1.msra.mxu0 %v1263
        %1282 = vmatprep.subr.mxu0 0.0
        %1283 = vmatpush1.msra.mxu0 0.0
        %1284 = vmatprep.subr.mxu0 0.0
        %1285 = vmatpush1.msra.mxu0 0.0
        %1286 = vmatprep.subr.mxu0 0.0
        %1287 = vmatpush1.msra.mxu0 0.0
        %1288 = vmatprep.subr.mxu0 0.0
        %1289 = vmatpush1.msra.mxu0 0.0
        %1290 = vmatprep.subr.mxu0 0.0
        %1291 = vmatpush1.msra.mxu0 0.0
        %1292 = vmatprep.subr.mxu0 0.0
        %1293 = vmatpush1.msra.mxu0 0.0
        %1294 = vmatprep.subr.mxu0 0.0
        %1295 = vmatpush1.msra.mxu0 0.0
        %1296 = vmatprep.subr.mxu0 0.0
        %1297 = vmatpush1.msra.mxu0 0.0
        %1298 = vmatprep.subr.mxu0 0.0
        %1299 = vmatpush1.msra.mxu0 0.0
        %1300 = vmatprep.subr.mxu0 0.0
        %1301 = vmatpush1.msra.mxu0 0.0
        %1302 = vmatprep.subr.mxu0 0.0
        %1303 = vmatpush1.msra.mxu0 0.0
        %1304 = vmatprep.subr.mxu0 0.0
        %1305 = vmatpush1.msra.mxu0 0.0
        %1306 = vmatprep.subr.mxu0 0.0
        %1307 = vmatpush1.msra.mxu0 0.0
        %1308 = vmatprep.subr.mxu0 0.0
        %1309 = vmatpush1.msra.mxu0 0.0
        %1310 = vmatprep.subr.mxu0 0.0
        %1311 = vmatpush1.msra.mxu0 0.0
        %1312 = vmatprep.subr.mxu0 0.0
        %1313 = vmatpush1.msra.mxu0 0.0
        %1314 = vmatprep.subr.mxu0 0.0
        %1315 = vmatpush1.msra.mxu0 0.0
        %1316 = vmatprep.subr.mxu0 0.0
        %1317 = vmatpush1.msra.mxu0 0.0
        %1318 = vmatprep.subr.mxu0 0.0
        %1319 = vmatpush1.msra.mxu0 0.0
        %1320 = vmatprep.subr.mxu0 0.0
        %1321 = vmatpush1.msra.mxu0 0.0
        %1322 = vmatprep.subr.mxu0 0.0
        %1323 = vmatpush1.msra.mxu0 0.0
        %1324 = vmatprep.subr.mxu0 0.0
        %1325 = vmatpush1.msra.mxu0 0.0
        %1326 = vmatprep.subr.mxu0 0.0
        %1327 = vmatpush1.msra.mxu0 0.0
        %1328 = vmatprep.subr.mxu0 0.0
        %1329 = vmatpush1.msra.mxu0 0.0
        %1330 = vmatprep.subr.mxu0 0.0
        %1331 = vmatpush1.msra.mxu0 0.0
        %1332 = vmatprep.subr.mxu0 0.0
        %1333 = vmatpush1.msra.mxu0 0.0
        %1334 = vmatprep.subr.mxu0 0.0
        %1335 = vmatpush1.msra.mxu0 0.0
        %1336 = vmatprep.subr.mxu0 0.0
        %1337 = vmatpush1.msra.mxu0 0.0
        %1338 = vmatprep.mubr.f32.mxu0 0.0
        %1339 = vmatmul.mubr.f32.gmra.mrb[0].mxu0 %v1272
        %v1340 = vpop.f32.mrb[0].mxu0
        %v1341 = vadd.f32 %v1269, %v1340
        %v1342 = vpop.f32.mrb[0].mxu0
        %1343 = vdwg.mxu0
        %v1344 = vadd.f32 %v494, %v1341
        %v1345 = vsel %vm506, %v1344, 0.0
        %1346 = vadd.xlane.f32.xlu0 %v1345
        %v1347 = vpop.xlane.xlu0 %1346
        %v1348 = vrcp.pop 32.0
        %v1349 = vmul.f32 %v1347, %v1348
        %v1350 = vsub.f32 %v1344, %v1349
        %v1351 = vmul.f32 %v1350, %v1350
        %v1352 = vsel %vm506, %v1351, 0.0
        %1353 = vadd.xlane.f32.xlu0 %v1352
        %v1354 = vpop.xlane.xlu0 %1353
        %v1355 = vmul.f32 %v1354, %v1348
        %v1356 = vadd.f32 %v1355, 1e-05
        %v1357 = vrsqrt.pop %v1356
        %v1358 = vmul.f32 %v1350, %v1357
        %v1359 = vld [vmem:[#allocation6] sm:$0x1]
        %v1361 = vlaneseq
        %v1362 = vshrl.u32 %v1361, 7
        %v1363 = vsub.s32 0, %v1362
        %v1364 = vrot.slane %v1359, %v1363
        %v1366 = vmul.f32 %v1358, %v1364
        %v1367 = vld [vmem:[#allocation8] sm:$0x1]
        %v1369 = vlaneseq
        %v1370 = vshrl.u32 %v1369, 7
        %v1371 = vsub.s32 0, %v1370
        %v1372 = vrot.slane %v1367, %v1371
        %v1374 = vadd.f32 %v1366, %v1372
        %v1375 = vld [vmem:[%s7] sm:$0xff]
        %v1376 = vld [vmem:[%s7 + $0x8] sm:$0xff]
        %v1377 = vld [vmem:[%s7 + $0x10] sm:$0xff]
        %v1378 = vld [vmem:[%s7 + $0x18] sm:$0xff]
        %v1379 = vld [vmem:[#allocation9] sm:$0x1]
        %v1381 = vlaneseq
        %v1382 = vshrl.u32 %v1381, 7
        %v1383 = vsub.s32 0, %v1382
        %v1384 = vrot.slane %v1379, %v1383
        %v1387 = vsel %vm506, %v1374, 0
        %1389 = vmatprep.subr.mxu0 0.0
        %1390 = vmatpush1.msra.mxu0 %v1375
        %1391 = vmatprep.subr.mxu0 0.0
        %1392 = vmatpush1.msra.mxu0 %v1376
        %1393 = vmatprep.subr.mxu0 0.0
        %1394 = vmatpush1.msra.mxu0 %v1377
        %1395 = vmatprep.subr.mxu0 0.0
        %1396 = vmatpush1.msra.mxu0 %v1378
        %1397 = vmatprep.subr.mxu0 0.0
        %1398 = vmatpush1.msra.mxu0 0.0
        %1399 = vmatprep.subr.mxu0 0.0
        %1400 = vmatpush1.msra.mxu0 0.0
        %1401 = vmatprep.subr.mxu0 0.0
        %1402 = vmatpush1.msra.mxu0 0.0
        %1403 = vmatprep.subr.mxu0 0.0
        %1404 = vmatpush1.msra.mxu0 0.0
        %1405 = vmatprep.subr.mxu0 0.0
        %1406 = vmatpush1.msra.mxu0 0.0
        %1407 = vmatprep.subr.mxu0 0.0
        %1408 = vmatpush1.msra.mxu0 0.0
        %1409 = vmatprep.subr.mxu0 0.0
        %1410 = vmatpush1.msra.mxu0 0.0
        %1411 = vmatprep.subr.mxu0 0.0
        %1412 = vmatpush1.msra.mxu0 0.0
        %1413 = vmatprep.subr.mxu0 0.0
        %1414 = vmatpush1.msra.mxu0 0.0
        %1415 = vmatprep.subr.mxu0 0.0
        %1416 = vmatpush1.msra.mxu0 0.0
        %1417 = vmatprep.subr.mxu0 0.0
        %1418 = vmatpush1.msra.mxu0 0.0
        %1419 = vmatprep.subr.mxu0 0.0
        %1420 = vmatpush1.msra.mxu0 0.0
        %1421 = vmatprep.subr.mxu0 0.0
        %1422 = vmatpush1.msra.mxu0 0.0
        %1423 = vmatprep.subr.mxu0 0.0
        %1424 = vmatpush1.msra.mxu0 0.0
        %1425 = vmatprep.subr.mxu0 0.0
        %1426 = vmatpush1.msra.mxu0 0.0
        %1427 = vmatprep.subr.mxu0 0.0
        %1428 = vmatpush1.msra.mxu0 0.0
        %1429 = vmatprep.subr.mxu0 0.0
        %1430 = vmatpush1.msra.mxu0 0.0
        %1431 = vmatprep.subr.mxu0 0.0
        %1432 = vmatpush1.msra.mxu0 0.0
        %1433 = vmatprep.subr.mxu0 0.0
        %1434 = vmatpush1.msra.mxu0 0.0
        %1435 = vmatprep.subr.mxu0 0.0
        %1436 = vmatpush1.msra.mxu0 0.0
        %1437 = vmatprep.subr.mxu0 0.0
        %1438 = vmatpush1.msra.mxu0 0.0
        %1439 = vmatprep.subr.mxu0 0.0
        %1440 = vmatpush1.msra.mxu0 0.0
        %1441 = vmatprep.subr.mxu0 0.0
        %1442 = vmatpush1.msra.mxu0 0.0
        %1443 = vmatprep.subr.mxu0 0.0
        %1444 = vmatpush1.msra.mxu0 0.0
        %1445 = vmatprep.subr.mxu0 0.0
        %1446 = vmatpush1.msra.mxu0 0.0
        %1447 = vmatprep.subr.mxu0 0.0
        %1448 = vmatpush1.msra.mxu0 0.0
        %1449 = vmatprep.subr.mxu0 0.0
        %1450 = vmatpush1.msra.mxu0 0.0
        %1451 = vmatprep.subr.mxu0 0.0
        %1452 = vmatpush1.msra.mxu0 0.0
        %1453 = vmatprep.mubr.f32.mxu0 0.0
        %1454 = vmatmul.mubr.f32.gmra.mrb[0].mxu0 %v1387
        %v1455 = vpop.f32.mrb[0].mxu0
        %v1456 = vadd.f32 %v1384, %v1455
        %v1457 = vpop.f32.mrb[0].mxu0
        %1458 = vdwg.mxu0
        %v1459 = vmax.f32 %v1456, 0.0
        %v1460 = vld [vmem:[%s9] sm:$0xff]
        %v1461 = vld [vmem:[%s9 + $0x8] sm:$0xff]
        %v1462 = vld [vmem:[%s9 + $0x10] sm:$0xff]
        %v1463 = vld [vmem:[%s9 + $0x18] sm:$0xff]
        %v1464 = vld [vmem:[%s9 + $0x20] sm:$0xff]
        %v1465 = vld [vmem:[%s9 + $0x28] sm:$0xff]
        %v1466 = vld [vmem:[%s9 + $0x30] sm:$0xff]
        %v1467 = vld [vmem:[%s9 + $0x38] sm:$0xff]
        %v1468 = vld [vmem:[%s10] sm:$0x1]
        %v1470 = vlaneseq
        %v1471 = vshrl.u32 %v1470, 7
        %v1472 = vsub.s32 0, %v1471
        %v1473 = vrot.slane %v1468, %v1472
        %vm1475 = vcmask 523264
        %v1477 = vsel %vm1475, %v1459, 0
        %1479 = vmatprep.subr.mxu0 0.0
        %1480 = vmatpush1.msra.mxu0 %v1460
        %1481 = vmatprep.subr.mxu0 0.0
        %1482 = vmatpush1.msra.mxu0 %v1461
        %1483 = vmatprep.subr.mxu0 0.0
        %1484 = vmatpush1.msra.mxu0 %v1462
        %1485 = vmatprep.subr.mxu0 0.0
        %1486 = vmatpush1.msra.mxu0 %v1463
        %1487 = vmatprep.subr.mxu0 0.0
        %1488 = vmatpush1.msra.mxu0 %v1464
        %1489 = vmatprep.subr.mxu0 0.0
        %1490 = vmatpush1.msra.mxu0 %v1465
        %1491 = vmatprep.subr.mxu0 0.0
        %1492 = vmatpush1.msra.mxu0 %v1466
        %1493 = vmatprep.subr.mxu0 0.0
        %1494 = vmatpush1.msra.mxu0 %v1467
        %1495 = vmatprep.subr.mxu0 0.0
        %1496 = vmatpush1.msra.mxu0 0.0
        %1497 = vmatprep.subr.mxu0 0.0
        %1498 = vmatpush1.msra.mxu0 0.0
        %1499 = vmatprep.subr.mxu0 0.0
        %1500 = vmatpush1.msra.mxu0 0.0
        %1501 = vmatprep.subr.mxu0 0.0
        %1502 = vmatpush1.msra.mxu0 0.0
        %1503 = vmatprep.subr.mxu0 0.0
        %1504 = vmatpush1.msra.mxu0 0.0
        %1505 = vmatprep.subr.mxu0 0.0
        %1506 = vmatpush1.msra.mxu0 0.0
        %1507 = vmatprep.subr.mxu0 0.0
        %1508 = vmatpush1.msra.mxu0 0.0
        %1509 = vmatprep.subr.mxu0 0.0
        %1510 = vmatpush1.msra.mxu0 0.0
        %1511 = vmatprep.subr.mxu0 0.0
        %1512 = vmatpush1.msra.mxu0 0.0
        %1513 = vmatprep.subr.mxu0 0.0
        %1514 = vmatpush1.msra.mxu0 0.0
        %1515 = vmatprep.subr.mxu0 0.0
        %1516 = vmatpush1.msra.mxu0 0.0
        %1517 = vmatprep.subr.mxu0 0.0
        %1518 = vmatpush1.msra.mxu0 0.0
        %1519 = vmatprep.subr.mxu0 0.0
        %1520 = vmatpush1.msra.mxu0 0.0
        %1521 = vmatprep.subr.mxu0 0.0
        %1522 = vmatpush1.msra.mxu0 0.0
        %1523 = vmatprep.subr.mxu0 0.0
        %1524 = vmatpush1.msra.mxu0 0.0
        %1525 = vmatprep.subr.mxu0 0.0
        %1526 = vmatpush1.msra.mxu0 0.0
        %1527 = vmatprep.subr.mxu0 0.0
        %1528 = vmatpush1.msra.mxu0 0.0
        %1529 = vmatprep.subr.mxu0 0.0
        %1530 = vmatpush1.msra.mxu0 0.0
        %1531 = vmatprep.subr.mxu0 0.0
        %1532 = vmatpush1.msra.mxu0 0.0
        %1533 = vmatprep.subr.mxu0 0.0
        %1534 = vmatpush1.msra.mxu0 0.0
        %1535 = vmatprep.subr.mxu0 0.0
        %1536 = vmatpush1.msra.mxu0 0.0
        %1537 = vmatprep.subr.mxu0 0.0
        %1538 = vmatpush1.msra.mxu0 0.0
        %1539 = vmatprep.subr.mxu0 0.0
        %1540 = vmatpush1.msra.mxu0 0.0
        %1541 = vmatprep.subr.mxu0 0.0
        %1542 = vmatpush1.msra.mxu0 0.0
        %1543 = vmatprep.mubr.f32.mxu0 0.0
        %1544 = vmatmul.mubr.f32.gmra.mrb[0].mxu0 %v1477
        %v1545 = vpop.f32.mrb[0].mxu0
        %v1546 = vadd.f32 %v1473, %v1545
        %v1547 = vpop.f32.mrb[0].mxu0
        %1548 = vdwg.mxu0
        %v1549 = vadd.f32 %v1374, %v1546
        %v1550 = vsel %vm506, %v1549, 0.0
        %1551 = vadd.xlane.f32.xlu0 %v1550
        %v1552 = vpop.xlane.xlu0 %1551
        %v1553 = vmul.f32 %v1552, %v1348
        %v1554 = vsub.f32 %v1549, %v1553
        %v1555 = vmul.f32 %v1554, %v1554
        %v1556 = vsel %vm506, %v1555, 0.0
        %1557 = vadd.xlane.f32.xlu0 %v1556
        %v1558 = vpop.xlane.xlu0 %1557
        %v1559 = vmul.f32 %v1558, %v1348
        %v1560 = vadd.f32 %v1559, 1e-05
        %v1561 = vrsqrt.pop %v1560
        %v1562 = vmul.f32 %v1554, %v1561
        %v1563 = vld [vmem:[%s11] sm:$0x1]
        %v1565 = vlaneseq
        %v1566 = vshrl.u32 %v1565, 7
        %v1567 = vsub.s32 0, %v1566
        %v1568 = vrot.slane %v1563, %v1567
        %v1570 = vmul.f32 %v1562, %v1568
        %v1571 = vld [vmem:[%s12] sm:$0x1]
        %v1573 = vlaneseq
        %v1574 = vshrl.u32 %v1573, 7
        %v1575 = vsub.s32 0, %v1574
        %v1576 = vrot.slane %v1571, %v1575
        %v1578 = vadd.f32 %v1570, %v1576
        %1579 = vst.msk [vmem:[%s493] sm:$0xff] %vm506, %v1578
        %s1580 = sand.u32 %s318, 1
        %s1581 = scalar_lea.sflag [#allocation5], %s1580
        %s1582 = sand.u32 %s318, 1
        %s1583 = smul.addr %s1582, 8
        %s1584 = scalar_lea.vmem [#allocation11], %s1583
        // Predicated region
        $region89: #{tpu_custom_call.1} parent=71 // pred_check
          %p1585 = pneg %p328
        $region90: #{tpu_custom_call.1} parent=71 // pred_check_branch
          %1587 = sbr.rel (%p1585) target = $region92
        $region91: #{tpu_custom_call.1} parent=71 // pred_region
          %s1589 = ssub.s32 128, 128
          %1590 = vsyncadd %s1581, %s1589
          %s1591 = smul.addr %s32, 128
          %s1592 = scalar_lea.hbm %s13, %s1591
          %s1594 = sshll.u32 %s1584, 4
          %s1595 = int_to_ptr.vmem [resolvable:$true] %s1594
          %1597 = dma.vmem_to_hbm [thread:$0]  %s1595, 128, %s1592, %s1581
        $region92: #{tpu_custom_call.1} parent=71 // pred_fallthru
          _
      $region72: #{tpu_custom_call.1} parent=5 // pred_fallthru
        _
      %p1598 = scmp.le.s32.totalorder 2, %s27
      // Predicated region
      $region93: #{tpu_custom_call.1} parent=5 // pred_check
        %p1599 = pneg %p1598
      $region94: #{tpu_custom_call.1} parent=5 // pred_check_branch
        %1601 = sbr.rel (%p1599) target = $region96
      $region95: #{tpu_custom_call.1} parent=5 // pred_region
        %s1602 = ssub.s32 %s27, 2
        // Predicated region
        $region97: #{tpu_custom_call.1} parent=95 // pred_check
          %p1603 = pneg %p334
        $region98: #{tpu_custom_call.1} parent=95 // pred_check_branch
          %1605 = sbr.rel (%p1603) target = $region100
        $region99: #{tpu_custom_call.1} parent=95 // pred_region
          %s1606 = sand.u32 %s319, 1
          %s1607 = scalar_lea.sflag [#allocation5], %s1606
          %s1608 = sand.u32 %s319, 1
          %s1609 = smul.addr %s1608, 8
          %s1610 = scalar_lea.vmem [#allocation11], %s1609
          %1611 = dma.done %s1607, 128
        $region100: #{tpu_custom_call.1} parent=95 // pred_fallthru
          _
      $region96: #{tpu_custom_call.1} parent=5 // pred_fallthru
        _
    $region6: #{tpu_custom_call.1} parent=1 // loop_footer
      %s31 = sadd.s32 1, %s27
    $region7: #{tpu_custom_call.1} parent=1 // loop_footer_branch
      %26 = sbr.rel target = $region3
    $region8: #{tpu_custom_call.1} parent=1 // loop_exit
      _
    %1612 = vsyncpa [#allocation4], 1
    %s1613 = scalar_lea.sflag [#allocation4], 1
    %1614 = vsyncpa %s1613, 1
    %1615 = vsyncpa [#allocation7], 1
    %1616 = vsyncpa [#allocation10], 1
    %1617 = vsyncpa [#allocation5], 1
    %s1618 = scalar_lea.sflag [#allocation5], 1
    %1619 = vsyncpa %s1618, 1

</llo_original>
